<compile_context>
chip_gen: v5e
topology: v5e:2x2
jax: 0.10.0
libtpu: 0.0.40
codegen_flags: <defaults>
</compile_context>

<pallas_src>
import functools

import jax
import jax.numpy as jnp
from jax.experimental import pallas as pl
from jax.experimental.pallas import tpu as pltpu


# ----------------------------------------------------------------------------
# Pallas kernel: both RITS directions, whole sequence resident in VMEM
# ----------------------------------------------------------------------------
def _brits_kernel(
    x_ref, m_ref, df_ref, db_ref,            # sequences: (T, B, F) each
    wg_ref, bg_ref,                          # temporal decay:  (F, R), (1, R)
    wh_ref, bh_ref,                          # history reg:     (R, F), (1, F)
    wxx_ref, wxm_ref, whg_ref, b4_ref, bp_ref,  # fused LSTM gates
    imp_ref, pred_ref,                       # outputs: (T,B,F), (pre_step,B,F)
    *, pre_step):
    T, B, F = x_ref.shape
    R = wg_ref.shape[1]
    is_fwd = pl.program_id(0) == 0           # direction 0 = forward

    # Loop-invariant parameter loads / bias broadcasts (hoisted out of time loop).
    wg = wg_ref[...]                          # (F, R)
    wh = wh_ref[...]                          # (R, F)
    wxx = wxx_ref[...]                        # (F, 4R)  [x_c part of gate weights]
    wxm = wxm_ref[...]                        # (F, 4R)  [mask part of gate weights]
    whg = whg_ref[...]                        # (R, 4R)  [hidden part of gate weights]
    bg = jnp.broadcast_to(bg_ref[...], (B, R))
    bh = jnp.broadcast_to(bh_ref[...], (B, F))
    b4 = jnp.broadcast_to(b4_ref[...], (B, 4 * R))
    bp = jnp.broadcast_to(bp_ref[...], (B, 4 * R))   # gate bias with m==1 folded in

    def gates(z, c):
        # z: (B, 4R) fused pre-activations, gate order [i | f | g | o]
        i = jax.nn.sigmoid(z[:, 0 * R:1 * R])
        f = jax.nn.sigmoid(z[:, 1 * R:2 * R])
        g = jnp.tanh(z[:, 2 * R:3 * R])
        o = jax.nn.sigmoid(z[:, 3 * R:4 * R])
        c_new = f * c + i * g
        h_new = o * jnp.tanh(c_new)
        return h_new, c_new

    def step(t, carry):
        h, c = carry
        # Backward direction walks the sequence reversed via index arithmetic.
        tt = jnp.where(is_fwd, t, T - 1 - t)
        x_t = x_ref[tt]                       # (B, F)
        m_t = m_ref[tt]                       # (B, F)
        d_t = jnp.where(is_fwd, df_ref[t], db_ref[t])  # (B, F)

        # temporal decay of the hidden state from the time lags
        gamma = jnp.exp(-jnp.maximum(
            jnp.dot(d_t, wg, preferred_element_type=jnp.float32) + bg, 0.0))
        hd = h * gamma

        # history-based estimate and complement
        x_hat = jnp.dot(hd, wh, preferred_element_type=jnp.float32) + bh
        x_c = m_t * x_t + (1.0 - m_t) * x_hat
        imp_ref[tt] = x_c                     # backward dir lands pre-"unflipped"

        # fused LSTM gates: [x_c | m] @ Wx == x_c@Wxx + m@Wxm (no concat)
        z = (jnp.dot(x_c, wxx, preferred_element_type=jnp.float32)
             + jnp.dot(m_t, wxm, preferred_element_type=jnp.float32)
             + jnp.dot(hd, whg, preferred_element_type=jnp.float32)
             + b4)
        return gates(z, c)

    h0 = jnp.zeros((B, R), jnp.float32)
    c0 = jnp.zeros((B, R), jnp.float32)
    h, c = jax.lax.fori_loop(0, T, step, (h0, c0))

    # autoregressive prediction after the last processed step
    def pstep(p, carry):
        hp, cp = carry
        xp = jnp.dot(hp, wh, preferred_element_type=jnp.float32) + bh
        pred_ref[p] = xp
        # mask == 1 here, so the m@Wxm term is folded into bp already
        z = (jnp.dot(xp, wxx, preferred_element_type=jnp.float32)
             + jnp.dot(hp, whg, preferred_element_type=jnp.float32)
             + bp)
        return gates(z, cp)

    jax.lax.fori_loop(0, pre_step, pstep, (h, c), unroll=True)


def brits_pallas(x_tbf, m_tbf, df_tbf, db_tbf, fused, *, rnn_dim, pre_step):
    """Both RITS passes.  Sequences are (T, B, F); fused params have a leading
    direction dim of size 2 (0 = forward, 1 = backward)."""
    T, B, F = x_tbf.shape
    del rnn_dim  # carried implicitly by the weight shapes

    seq_spec = pl.BlockSpec((T, B, F), lambda d: (0, 0, 0))

    def param_spec(p):
        return pl.BlockSpec((None,) + p.shape[1:], lambda d: (d, 0, 0))

    grid_spec = pltpu.PrefetchScalarGridSpec(
        num_scalar_prefetch=0,
        grid=(2,),                                    # direction axis
        in_specs=[seq_spec, seq_spec, seq_spec, seq_spec]
                 + [param_spec(p) for p in fused],
        out_specs=[
            pl.BlockSpec((None, T, B, F), lambda d: (d, 0, 0, 0)),
            pl.BlockSpec((None, pre_step, B, F), lambda d: (d, 0, 0, 0)),
        ],
    )

    imp, pred = pl.pallas_call(
        functools.partial(_brits_kernel, pre_step=pre_step),
        out_shape=(
            jax.ShapeDtypeStruct((2, T, B, F), jnp.float32),
            jax.ShapeDtypeStruct((2, pre_step, B, F), jnp.float32),
        ),
        grid_spec=grid_spec,
        compiler_params=pltpu.CompilerParams(
            # directions are independent -> parallel (uses both TCs on v7x)
            dimension_semantics=("parallel",)),
    )(x_tbf, m_tbf, df_tbf, db_tbf, *fused)
    return imp, pred


# ----------------------------------------------------------------------------
# Parameter init (deterministic, synthetic) — canonical 16-tensor RITS params
# ----------------------------------------------------------------------------
def init_rits_params(key, feat, rnn_dim):
    keys = jax.random.split(key, 16)
    s = 0.1

    def w(k, shape):
        return (jax.random.normal(k, shape, jnp.float32) * s).astype(jnp.float32)

    return (
        w(keys[0], (feat, rnn_dim)),  w(keys[1], (1, rnn_dim)),      # gamma decay
        w(keys[2], (rnn_dim, feat)),  w(keys[3], (1, feat)),         # history reg
        w(keys[4], (2 * feat, rnn_dim)), w(keys[5], (rnn_dim, rnn_dim)), w(keys[6], (1, rnn_dim)),   # i
        w(keys[7], (2 * feat, rnn_dim)), w(keys[8], (rnn_dim, rnn_dim)), w(keys[9], (1, rnn_dim)),   # f
        w(keys[10], (2 * feat, rnn_dim)), w(keys[11], (rnn_dim, rnn_dim)), w(keys[12], (1, rnn_dim)),  # g
        w(keys[13], (2 * feat, rnn_dim)), w(keys[14], (rnn_dim, rnn_dim)), w(keys[15], (1, rnn_dim)),  # o
    )


def _fuse_rits_params(params):
    """Fuse the 4 LSTM gates into single (F,4R)/(R,4R)/(1,4R) tensors and
    split the input weight into x-part / mask-part (removes the concat)."""
    (wg, bg, wh, bh,
     wxi, whi, bi, wxf, whf, bf,
     wxc, whc, bc, wxo, who, bo) = params
    F = wg.shape[0]
    wxx = jnp.concatenate([wxi[:F], wxf[:F], wxc[:F], wxo[:F]], axis=1)   # (F, 4R)
    wxm = jnp.concatenate([wxi[F:], wxf[F:], wxc[F:], wxo[F:]], axis=1)   # (F, 4R)
    whg = jnp.concatenate([whi, whf, whc, who], axis=1)                    # (R, 4R)
    b4 = jnp.concatenate([bi, bf, bc, bo], axis=1)                         # (1, 4R)
    bp = b4 + jnp.sum(wxm, axis=0, keepdims=True)   # prediction loop: m == 1 folded
    return wg, bg, wh, bh, wxx, wxm, whg, b4, bp


# ----------------------------------------------------------------------------
# BRITS forward (bidirectional wrapper, mirrors the PyTorch module)
# ----------------------------------------------------------------------------
def brits_forward(x, x_mask, time_lag, time_lag_reverse, params_f, params_b,
                  *, rnn_dim, pre_step):
    # inputs: (batch, time_step, num_node, input_dim)
    B, T, N, D = x.shape
    feat = N * D

    def to_tbf(a):
        return jnp.transpose(a, (1, 0, 2, 3)).reshape(T, B, feat)

    x_tbf, m_tbf = to_tbf(x), to_tbf(x_mask)
    df_tbf, db_tbf = to_tbf(time_lag), to_tbf(time_lag_reverse)

    pf = _fuse_rits_params(params_f)
    pb = _fuse_rits_params(params_b)
    fused = tuple(jnp.stack([a, b], axis=0) for a, b in zip(pf, pb))

    imp, pred = brits_pallas(x_tbf, m_tbf, df_tbf, db_tbf, fused,
                             rnn_dim=rnn_dim, pre_step=pre_step)

    # imp[1] (backward direction) is already written in forward time order
    # inside the kernel, so no jnp.flip is needed here.
    imp_f = imp[0].reshape(T, B, N, D).transpose(1, 0, 2, 3)
    imp_b = imp[1].reshape(T, B, N, D).transpose(1, 0, 2, 3)
    pred_f = pred[0].reshape(pre_step, B, N, D).transpose(1, 0, 2, 3)

    impute = (imp_f + imp_b) / 2.0
    return impute, pred_f


# ----------------------------------------------------------------------------
# Pure-JAX reference (unfused params) for correctness checking
# ----------------------------------------------------------------------------
def _rits_ref(x_tbf, m_tbf, d_tbf, params, pre_step):
    (wg, bg, wh, bh,
     wxi, whi, bi, wxf, whf, bf,
     wxc, whc, bc, wxo, who, bo) = params
    T, B, F = x_tbf.shape
    R = wg.shape[1]
    h = jnp.zeros((B, R), jnp.float32)
    c = jnp.zeros((B, R), jnp.float32)

    def lstm(inp, h, c):
        i = jax.nn.sigmoid(inp @ wxi + h @ whi + bi)
        f = jax.nn.sigmoid(inp @ wxf + h @ whf + bf)
        g = jnp.tanh(inp @ wxc + h @ whc + bc)
        o = jax.nn.sigmoid(inp @ wxo + h @ who + bo)
        c = f * c + i * g
        h = o * jnp.tanh(c)
        return h, c

    imps = []
    for t in range(T):
        gamma = jnp.exp(-jnp.maximum(d_tbf[t] @ wg + bg, 0.0))
        h = h * gamma
        x_hat = h @ wh + bh
        x_c = m_tbf[t] * x_tbf[t] + (1 - m_tbf[t]) * x_hat
        imps.append(x_c)
        h, c = lstm(jnp.concatenate([x_c, m_tbf[t]], -1), h, c)
    preds = []
    for _ in range(pre_step):
        xp = h @ wh + bh
        preds.append(xp)
        h, c = lstm(jnp.concatenate([xp, jnp.ones_like(xp)], -1), h, c)
    return jnp.stack(imps), jnp.stack(preds)


def _brits_ref(x, x_mask, time_lag, time_lag_reverse, params_f, params_b,
               *, pre_step):
    B, T, N, D = x.shape
    feat = N * D

    def to_tbf(a):
        return jnp.transpose(a, (1, 0, 2, 3)).reshape(T, B, feat)

    imp_f, pred_f = _rits_ref(to_tbf(x), to_tbf(x_mask), to_tbf(time_lag),
                              params_f, pre_step)
    imp_b, _ = _rits_ref(to_tbf(jnp.flip(x, 1)), to_tbf(jnp.flip(x_mask, 1)),
                         to_tbf(time_lag_reverse), params_b, pre_step)
    imp_b = jnp.flip(imp_b, axis=0)
    imp_f = imp_f.reshape(T, B, N, D).transpose(1, 0, 2, 3)
    imp_b = imp_b.reshape(T, B, N, D).transpose(1, 0, 2, 3)
    pred_f = pred_f.reshape(pre_step, B, N, D).transpose(1, 0, 2, 3)
    return (imp_f + imp_b) / 2.0, pred_f


# ----------------------------------------------------------------------------
if __name__ == "__main__":
    batch, time_step, num_node, input_dim = 2, 8, 4, 2
    rnn_dim, pre_step = 32, 2
    feat = num_node * input_dim

    key = jax.random.PRNGKey(0)
    k_x, k_m, k_d, k_dr, k_pf, k_pb = jax.random.split(key, 6)

    x = jax.random.normal(k_x, (batch, time_step, num_node, input_dim), jnp.float32)
    x_mask = (jax.random.uniform(k_m, (batch, time_step, num_node, input_dim))
              > 0.3).astype(jnp.float32)
    time_lag = jax.random.uniform(k_d, (batch, time_step, num_node, input_dim),
                                  jnp.float32, 0.0, 2.0)
    time_lag_reverse = jax.random.uniform(
        k_dr, (batch, time_step, num_node, input_dim), jnp.float32, 0.0, 2.0)

    params_f = init_rits_params(k_pf, feat, rnn_dim)
    params_b = init_rits_params(k_pb, feat, rnn_dim)

    fwd = jax.jit(functools.partial(brits_forward, rnn_dim=rnn_dim,
                                    pre_step=pre_step))
    impute, predict = fwd(x, x_mask, time_lag, time_lag_reverse,
                          params_f, params_b)
    impute = jax.block_until_ready(impute)
    predict = jax.block_until_ready(predict)

    impute_ref, predict_ref = _brits_ref(
        x, x_mask, time_lag, time_lag_reverse, params_f, params_b,
        pre_step=pre_step)

    assert impute.shape == (batch, time_step, num_node, input_dim)
    assert predict.shape == (batch, pre_step, num_node, input_dim)
    assert jnp.allclose(impute, impute_ref, atol=1e-3, rtol=1e-3)
    assert jnp.allclose(predict, predict_ref, atol=1e-3, rtol=1e-3)

    print("KERNEL_OK")
</pallas_src>

<mosaic_0001>
module attributes {stable_mosaic.version = 11 : i64} {
  func.func @_brits_kernel(%arg0: i32, %arg1: memref<8x2x8xf32, #tpu.memory_space<vmem>>, %arg2: memref<8x2x8xf32, #tpu.memory_space<vmem>>, %arg3: memref<8x2x8xf32, #tpu.memory_space<vmem>>, %arg4: memref<8x2x8xf32, #tpu.memory_space<vmem>>, %arg5: memref<1x8x32xf32, #tpu.memory_space<vmem>>, %arg6: memref<1x1x32xf32, #tpu.memory_space<vmem>>, %arg7: memref<1x32x8xf32, #tpu.memory_space<vmem>>, %arg8: memref<1x1x8xf32, #tpu.memory_space<vmem>>, %arg9: memref<1x8x128xf32, #tpu.memory_space<vmem>>, %arg10: memref<1x8x128xf32, #tpu.memory_space<vmem>>, %arg11: memref<1x32x128xf32, #tpu.memory_space<vmem>>, %arg12: memref<1x1x128xf32, #tpu.memory_space<vmem>>, %arg13: memref<1x1x128xf32, #tpu.memory_space<vmem>>, %arg14: memref<1x8x2x8xf32, #tpu.memory_space<vmem>>, %arg15: memref<1x2x2x8xf32, #tpu.memory_space<vmem>>) attributes {dimension_semantics = [#tpu.dimension_semantics<parallel>], iteration_bounds = array<i64: 2>, scalar_prefetch = 0 : i64, scratch_operands = 0 : i64, tpu.core_type = #tpu.core_type<tc>, window_params = [{pipeline_mode = #tpu.pipeline_mode<synchronous>, transform_indices = @transform_0, window_bounds = array<i64: 8, 2, 8>}, {pipeline_mode = #tpu.pipeline_mode<synchronous>, transform_indices = @transform_1, window_bounds = array<i64: 8, 2, 8>}, {pipeline_mode = #tpu.pipeline_mode<synchronous>, transform_indices = @transform_2, window_bounds = array<i64: 8, 2, 8>}, {pipeline_mode = #tpu.pipeline_mode<synchronous>, transform_indices = @transform_3, window_bounds = array<i64: 8, 2, 8>}, {transform_indices = @transform_4, window_bounds = array<i64: 1, 8, 32>}, {transform_indices = @transform_5, window_bounds = array<i64: 1, 1, 32>}, {transform_indices = @transform_6, window_bounds = array<i64: 1, 32, 8>}, {transform_indices = @transform_7, window_bounds = array<i64: 1, 1, 8>}, {transform_indices = @transform_8, window_bounds = array<i64: 1, 8, 128>}, {transform_indices = @transform_9, window_bounds = array<i64: 1, 8, 128>}, {transform_indices = @transform_10, window_bounds = array<i64: 1, 32, 128>}, {transform_indices = @transform_11, window_bounds = array<i64: 1, 1, 128>}, {transform_indices = @transform_12, window_bounds = array<i64: 1, 1, 128>}, {transform_indices = @transform_13, window_bounds = array<i64: 1, 8, 2, 8>}, {transform_indices = @transform_14, window_bounds = array<i64: 1, 2, 2, 8>}]} {
    %c0_i32 = arith.constant 0 : i32
    %0 = arith.cmpi eq, %arg0, %c0_i32 : i32
    %c0 = arith.constant 0 : index
    %c0_0 = arith.constant 0 : index
    %c0_1 = arith.constant 0 : index
    %1 = vector.load %arg5[%c0, %c0_0, %c0_1] : memref<1x8x32xf32, #tpu.memory_space<vmem>>, vector<1x8x32xf32>
    %2 = vector.shape_cast %1 : vector<1x8x32xf32> to vector<8x32xf32>
    %c0_2 = arith.constant 0 : index
    %c0_3 = arith.constant 0 : index
    %c0_4 = arith.constant 0 : index
    %3 = vector.load %arg7[%c0_2, %c0_3, %c0_4] : memref<1x32x8xf32, #tpu.memory_space<vmem>>, vector<1x32x8xf32>
    %4 = vector.shape_cast %3 : vector<1x32x8xf32> to vector<32x8xf32>
    %c0_5 = arith.constant 0 : index
    %c0_6 = arith.constant 0 : index
    %c0_7 = arith.constant 0 : index
    %5 = vector.load %arg9[%c0_5, %c0_6, %c0_7] : memref<1x8x128xf32, #tpu.memory_space<vmem>>, vector<1x8x128xf32>
    %6 = vector.shape_cast %5 : vector<1x8x128xf32> to vector<8x128xf32>
    %c0_8 = arith.constant 0 : index
    %c0_9 = arith.constant 0 : index
    %c0_10 = arith.constant 0 : index
    %7 = vector.load %arg10[%c0_8, %c0_9, %c0_10] : memref<1x8x128xf32, #tpu.memory_space<vmem>>, vector<1x8x128xf32>
    %8 = vector.shape_cast %7 : vector<1x8x128xf32> to vector<8x128xf32>
    %c0_11 = arith.constant 0 : index
    %c0_12 = arith.constant 0 : index
    %c0_13 = arith.constant 0 : index
    %9 = vector.load %arg11[%c0_11, %c0_12, %c0_13] : memref<1x32x128xf32, #tpu.memory_space<vmem>>, vector<1x32x128xf32>
    %10 = vector.shape_cast %9 : vector<1x32x128xf32> to vector<32x128xf32>
    %c0_14 = arith.constant 0 : index
    %c0_15 = arith.constant 0 : index
    %c0_16 = arith.constant 0 : index
    %11 = vector.load %arg6[%c0_14, %c0_15, %c0_16] : memref<1x1x32xf32, #tpu.memory_space<vmem>>, vector<1x1x32xf32>
    %12 = vector.shape_cast %11 : vector<1x1x32xf32> to vector<1x32xf32>
    %13 = vector.shape_cast %12 : vector<1x32xf32> to vector<1x32xf32>
    %14 = vector.broadcast %13 : vector<1x32xf32> to vector<2x32xf32>
    %c0_17 = arith.constant 0 : index
    %c0_18 = arith.constant 0 : index
    %c0_19 = arith.constant 0 : index
    %15 = vector.load %arg8[%c0_17, %c0_18, %c0_19] : memref<1x1x8xf32, #tpu.memory_space<vmem>>, vector<1x1x8xf32>
    %16 = vector.shape_cast %15 : vector<1x1x8xf32> to vector<1x8xf32>
    %17 = vector.shape_cast %16 : vector<1x8xf32> to vector<1x8xf32>
    %18 = vector.broadcast %17 : vector<1x8xf32> to vector<2x8xf32>
    %c0_20 = arith.constant 0 : index
    %c0_21 = arith.constant 0 : index
    %c0_22 = arith.constant 0 : index
    %19 = vector.load %arg12[%c0_20, %c0_21, %c0_22] : memref<1x1x128xf32, #tpu.memory_space<vmem>>, vector<1x1x128xf32>
    %20 = vector.shape_cast %19 : vector<1x1x128xf32> to vector<1x128xf32>
    %21 = vector.shape_cast %20 : vector<1x128xf32> to vector<1x128xf32>
    %22 = vector.broadcast %21 : vector<1x128xf32> to vector<2x128xf32>
    %c0_23 = arith.constant 0 : index
    %c0_24 = arith.constant 0 : index
    %c0_25 = arith.constant 0 : index
    %23 = vector.load %arg13[%c0_23, %c0_24, %c0_25] : memref<1x1x128xf32, #tpu.memory_space<vmem>>, vector<1x1x128xf32>
    %24 = vector.shape_cast %23 : vector<1x1x128xf32> to vector<1x128xf32>
    %25 = vector.shape_cast %24 : vector<1x128xf32> to vector<1x128xf32>
    %26 = vector.broadcast %25 : vector<1x128xf32> to vector<2x128xf32>
    %cst = arith.constant 0.000000e+00 : f32
    %27 = vector.broadcast %cst : f32 to vector<2x32xf32>
    %cst_26 = arith.constant 0.000000e+00 : f32
    %28 = vector.broadcast %cst_26 : f32 to vector<2x32xf32>
    %c0_i32_27 = arith.constant 0 : i32
    %c8_i32 = arith.constant 8 : i32
    %29 = arith.addi %c0_i32_27, %c8_i32 : i32
    %c1_i32 = arith.constant 1 : i32
    %30:2 = scf.for %arg16 = %c0_i32_27 to %29 step %c1_i32 iter_args(%arg17 = %27, %arg18 = %28) -> (vector<2x32xf32>, vector<2x32xf32>)  : i32 {
      %c7_i32 = arith.constant 7 : i32
      %101 = arith.subi %c7_i32, %arg16 : i32
      %102 = arith.select %0, %arg16, %101 : i32
      %103 = arith.index_cast %102 : i32 to index
      %c0_49 = arith.constant 0 : index
      %c0_50 = arith.constant 0 : index
      %104 = vector.load %arg1[%103, %c0_49, %c0_50] : memref<8x2x8xf32, #tpu.memory_space<vmem>>, vector<1x2x8xf32>
      %105 = vector.shape_cast %104 : vector<1x2x8xf32> to vector<2x8xf32>
      %106 = arith.index_cast %102 : i32 to index
      %c0_51 = arith.constant 0 : index
      %c0_52 = arith.constant 0 : index
      %107 = vector.load %arg2[%106, %c0_51, %c0_52] : memref<8x2x8xf32, #tpu.memory_space<vmem>>, vector<1x2x8xf32>
      %108 = vector.shape_cast %107 : vector<1x2x8xf32> to vector<2x8xf32>
      %109 = arith.index_cast %arg16 : i32 to index
      %c0_53 = arith.constant 0 : index
      %c0_54 = arith.constant 0 : index
      %110 = vector.load %arg3[%109, %c0_53, %c0_54] : memref<8x2x8xf32, #tpu.memory_space<vmem>>, vector<1x2x8xf32>
      %111 = vector.shape_cast %110 : vector<1x2x8xf32> to vector<2x8xf32>
      %112 = arith.index_cast %arg16 : i32 to index
      %c0_55 = arith.constant 0 : index
      %c0_56 = arith.constant 0 : index
      %113 = vector.load %arg4[%112, %c0_55, %c0_56] : memref<8x2x8xf32, #tpu.memory_space<vmem>>, vector<1x2x8xf32>
      %114 = vector.shape_cast %113 : vector<1x2x8xf32> to vector<2x8xf32>
      %115 = arith.select %0, %111, %114 : vector<2x8xf32>
      %cst_57 = arith.constant dense<0.000000e+00> : vector<2x32xf32>
      %116 = tpu.matmul %115, %2, %cst_57 {dimension_numbers = #tpu.dot_dimension_numbers<[1], [0], [0], [1], [0, 0, 1, 1], [], []>} : vector<2x8xf32>, vector<8x32xf32>, vector<2x32xf32> -> vector<2x32xf32>
      %117 = arith.addf %116, %14 : vector<2x32xf32>
      %cst_58 = arith.constant 0.000000e+00 : f32
      %118 = vector.broadcast %cst_58 : f32 to vector<2x32xf32>
      %119 = arith.maximumf %117, %118 : vector<2x32xf32>
      %cst_59 = arith.constant 0.000000e+00 : f32
      %120 = vector.broadcast %cst_59 : f32 to vector<2x32xf32>
      %121 = arith.subf %120, %119 : vector<2x32xf32>
      %122 = math.exp %121 : vector<2x32xf32>
      %123 = arith.mulf %arg17, %122 : vector<2x32xf32>
      %cst_60 = arith.constant dense<0.000000e+00> : vector<2x8xf32>
      %124 = tpu.matmul %123, %4, %cst_60 {dimension_numbers = #tpu.dot_dimension_numbers<[1], [0], [0], [1], [0, 0, 1, 1], [], []>} : vector<2x32xf32>, vector<32x8xf32>, vector<2x8xf32> -> vector<2x8xf32>
      %125 = arith.addf %124, %18 : vector<2x8xf32>
      %126 = arith.mulf %108, %105 : vector<2x8xf32>
      %cst_61 = arith.constant 1.000000e+00 : f32
      %127 = vector.broadcast %cst_61 : f32 to vector<2x8xf32>
      %128 = arith.subf %127, %108 : vector<2x8xf32>
      %129 = arith.mulf %128, %125 : vector<2x8xf32>
      %130 = arith.addf %126, %129 : vector<2x8xf32>
      %c0_62 = arith.constant 0 : index
      %131 = arith.index_cast %102 : i32 to index
      %c0_63 = arith.constant 0 : index
      %c0_64 = arith.constant 0 : index
      %132 = vector.load %arg14[%c0_62, %131, %c0_63, %c0_64] : memref<1x8x2x8xf32, #tpu.memory_space<vmem>>, vector<1x1x2x8xf32>
      %133 = vector.shape_cast %132 : vector<1x1x2x8xf32> to vector<2x8xf32>
      %134 = vector.shape_cast %130 : vector<2x8xf32> to vector<1x1x2x8xf32>
      tpu.vector_store %arg14[%c0_62, %131, %c0_63, %c0_64], %134 {strides = array<i32>} : memref<1x8x2x8xf32, #tpu.memory_space<vmem>>, vector<1x1x2x8xf32>,
      %cst_65 = arith.constant dense<0.000000e+00> : vector<2x128xf32>
      %135 = tpu.matmul %130, %6, %cst_65 {dimension_numbers = #tpu.dot_dimension_numbers<[1], [0], [0], [1], [0, 0, 1, 1], [], []>} : vector<2x8xf32>, vector<8x128xf32>, vector<2x128xf32> -> vector<2x128xf32>
      %cst_66 = arith.constant dense<0.000000e+00> : vector<2x128xf32>
      %136 = tpu.matmul %108, %8, %cst_66 {dimension_numbers = #tpu.dot_dimension_numbers<[1], [0], [0], [1], [0, 0, 1, 1], [], []>} : vector<2x8xf32>, vector<8x128xf32>, vector<2x128xf32> -> vector<2x128xf32>
      %137 = arith.addf %135, %136 : vector<2x128xf32>
      %cst_67 = arith.constant dense<0.000000e+00> : vector<2x128xf32>
      %138 = tpu.matmul %123, %10, %cst_67 {dimension_numbers = #tpu.dot_dimension_numbers<[1], [0], [0], [1], [0, 0, 1, 1], [], []>} : vector<2x32xf32>, vector<32x128xf32>, vector<2x128xf32> -> vector<2x128xf32>
      %139 = arith.addf %137, %138 : vector<2x128xf32>
      %140 = arith.addf %139, %22 : vector<2x128xf32>
      %141 = vector.extract_strided_slice %140 {offsets = [0, 0], sizes = [2, 32], strides = [1, 1]} : vector<2x128xf32> to vector<2x32xf32>
      %142 = arith.negf %141 : vector<2x32xf32>
      %143 = math.exp %142 : vector<2x32xf32>
      %cst_68 = arith.constant 1.000000e+00 : f32
      %144 = vector.broadcast %cst_68 : f32 to vector<2x32xf32>
      %145 = arith.addf %144, %143 : vector<2x32xf32>
      %146 = arith.divf %144, %145 : vector<2x32xf32>
      %147 = vector.extract_strided_slice %140 {offsets = [0, 32], sizes = [2, 32], strides = [1, 1]} : vector<2x128xf32> to vector<2x32xf32>
      %148 = arith.negf %147 : vector<2x32xf32>
      %149 = math.exp %148 : vector<2x32xf32>
      %cst_69 = arith.constant 1.000000e+00 : f32
      %150 = vector.broadcast %cst_69 : f32 to vector<2x32xf32>
      %151 = arith.addf %150, %149 : vector<2x32xf32>
      %152 = arith.divf %150, %151 : vector<2x32xf32>
      %153 = vector.extract_strided_slice %140 {offsets = [0, 64], sizes = [2, 32], strides = [1, 1]} : vector<2x128xf32> to vector<2x32xf32>
      %154 = math.tanh %153 : vector<2x32xf32>
      %155 = vector.extract_strided_slice %140 {offsets = [0, 96], sizes = [2, 32], strides = [1, 1]} : vector<2x128xf32> to vector<2x32xf32>
      %156 = arith.negf %155 : vector<2x32xf32>
      %157 = math.exp %156 : vector<2x32xf32>
      %cst_70 = arith.constant 1.000000e+00 : f32
      %158 = vector.broadcast %cst_70 : f32 to vector<2x32xf32>
      %159 = arith.addf %158, %157 : vector<2x32xf32>
      %160 = arith.divf %158, %159 : vector<2x32xf32>
      %161 = arith.mulf %152, %arg18 : vector<2x32xf32>
      %162 = arith.mulf %146, %154 : vector<2x32xf32>
      %163 = arith.addf %161, %162 : vector<2x32xf32>
      %164 = math.tanh %163 : vector<2x32xf32>
      %165 = arith.mulf %160, %164 : vector<2x32xf32>
      scf.yield %165, %163 : vector<2x32xf32>, vector<2x32xf32>
    }
    %c8_i32_28 = arith.constant 8 : i32
    %c0_i32_29 = arith.constant 0 : i32
    %cst_30 = arith.constant dense<0.000000e+00> : vector<2x8xf32>
    %31 = tpu.matmul %30#0, %4, %cst_30 {dimension_numbers = #tpu.dot_dimension_numbers<[1], [0], [0], [1], [0, 0, 1, 1], [], []>} : vector<2x32xf32>, vector<32x8xf32>, vector<2x8xf32> -> vector<2x8xf32>
    %32 = arith.addf %31, %18 : vector<2x8xf32>
    %c0_31 = arith.constant 0 : index
    %33 = arith.index_cast %c0_i32_29 : i32 to index
    %c0_32 = arith.constant 0 : index
    %c0_33 = arith.constant 0 : index
    %34 = vector.load %arg15[%c0_31, %33, %c0_32, %c0_33] : memref<1x2x2x8xf32, #tpu.memory_space<vmem>>, vector<1x1x2x8xf32>
    %35 = vector.shape_cast %34 : vector<1x1x2x8xf32> to vector<2x8xf32>
    %36 = vector.shape_cast %32 : vector<2x8xf32> to vector<1x1x2x8xf32>
    tpu.vector_store %arg15[%c0_31, %33, %c0_32, %c0_33], %36 {strides = array<i32>} : memref<1x2x2x8xf32, #tpu.memory_space<vmem>>, vector<1x1x2x8xf32>,
    %cst_34 = arith.constant dense<0.000000e+00> : vector<2x128xf32>
    %37 = tpu.matmul %32, %6, %cst_34 {dimension_numbers = #tpu.dot_dimension_numbers<[1], [0], [0], [1], [0, 0, 1, 1], [], []>} : vector<2x8xf32>, vector<8x128xf32>, vector<2x128xf32> -> vector<2x128xf32>
    %cst_35 = arith.constant dense<0.000000e+00> : vector<2x128xf32>
    %38 = tpu.matmul %30#0, %10, %cst_35 {dimension_numbers = #tpu.dot_dimension_numbers<[1], [0], [0], [1], [0, 0, 1, 1], [], []>} : vector<2x32xf32>, vector<32x128xf32>, vector<2x128xf32> -> vector<2x128xf32>
    %39 = arith.addf %37, %38 : vector<2x128xf32>
    %40 = arith.addf %39, %26 : vector<2x128xf32>
    %41 = vector.extract_strided_slice %40 {offsets = [0, 0], sizes = [2, 32], strides = [1, 1]} : vector<2x128xf32> to vector<2x32xf32>
    %42 = arith.negf %41 : vector<2x32xf32>
    %43 = math.exp %42 : vector<2x32xf32>
    %cst_36 = arith.constant 1.000000e+00 : f32
    %44 = vector.broadcast %cst_36 : f32 to vector<2x32xf32>
    %45 = arith.addf %44, %43 : vector<2x32xf32>
    %46 = arith.divf %44, %45 : vector<2x32xf32>
    %47 = vector.extract_strided_slice %40 {offsets = [0, 32], sizes = [2, 32], strides = [1, 1]} : vector<2x128xf32> to vector<2x32xf32>
    %48 = arith.negf %47 : vector<2x32xf32>
    %49 = math.exp %48 : vector<2x32xf32>
    %cst_37 = arith.constant 1.000000e+00 : f32
    %50 = vector.broadcast %cst_37 : f32 to vector<2x32xf32>
    %51 = arith.addf %50, %49 : vector<2x32xf32>
    %52 = arith.divf %50, %51 : vector<2x32xf32>
    %53 = vector.extract_strided_slice %40 {offsets = [0, 64], sizes = [2, 32], strides = [1, 1]} : vector<2x128xf32> to vector<2x32xf32>
    %54 = math.tanh %53 : vector<2x32xf32>
    %55 = vector.extract_strided_slice %40 {offsets = [0, 96], sizes = [2, 32], strides = [1, 1]} : vector<2x128xf32> to vector<2x32xf32>
    %56 = arith.negf %55 : vector<2x32xf32>
    %57 = math.exp %56 : vector<2x32xf32>
    %cst_38 = arith.constant 1.000000e+00 : f32
    %58 = vector.broadcast %cst_38 : f32 to vector<2x32xf32>
    %59 = arith.addf %58, %57 : vector<2x32xf32>
    %60 = arith.divf %58, %59 : vector<2x32xf32>
    %61 = arith.mulf %52, %30#1 : vector<2x32xf32>
    %62 = arith.mulf %46, %54 : vector<2x32xf32>
    %63 = arith.addf %61, %62 : vector<2x32xf32>
    %64 = math.tanh %63 : vector<2x32xf32>
    %65 = arith.mulf %60, %64 : vector<2x32xf32>
    %c1_i32_39 = arith.constant 1 : i32
    %cst_40 = arith.constant dense<0.000000e+00> : vector<2x8xf32>
    %66 = tpu.matmul %65, %4, %cst_40 {dimension_numbers = #tpu.dot_dimension_numbers<[1], [0], [0], [1], [0, 0, 1, 1], [], []>} : vector<2x32xf32>, vector<32x8xf32>, vector<2x8xf32> -> vector<2x8xf32>
    %67 = arith.addf %66, %18 : vector<2x8xf32>
    %c0_41 = arith.constant 0 : index
    %68 = arith.index_cast %c1_i32_39 : i32 to index
    %c0_42 = arith.constant 0 : index
    %c0_43 = arith.constant 0 : index
    %69 = vector.load %arg15[%c0_41, %68, %c0_42, %c0_43] : memref<1x2x2x8xf32, #tpu.memory_space<vmem>>, vector<1x1x2x8xf32>
    %70 = vector.shape_cast %69 : vector<1x1x2x8xf32> to vector<2x8xf32>
    %71 = vector.shape_cast %67 : vector<2x8xf32> to vector<1x1x2x8xf32>
    tpu.vector_store %arg15[%c0_41, %68, %c0_42, %c0_43], %71 {strides = array<i32>} : memref<1x2x2x8xf32, #tpu.memory_space<vmem>>, vector<1x1x2x8xf32>,
    %cst_44 = arith.constant dense<0.000000e+00> : vector<2x128xf32>
    %72 = tpu.matmul %67, %6, %cst_44 {dimension_numbers = #tpu.dot_dimension_numbers<[1], [0], [0], [1], [0, 0, 1, 1], [], []>} : vector<2x8xf32>, vector<8x128xf32>, vector<2x128xf32> -> vector<2x128xf32>
    %cst_45 = arith.constant dense<0.000000e+00> : vector<2x128xf32>
    %73 = tpu.matmul %65, %10, %cst_45 {dimension_numbers = #tpu.dot_dimension_numbers<[1], [0], [0], [1], [0, 0, 1, 1], [], []>} : vector<2x32xf32>, vector<32x128xf32>, vector<2x128xf32> -> vector<2x128xf32>
    %74 = arith.addf %72, %73 : vector<2x128xf32>
    %75 = arith.addf %74, %26 : vector<2x128xf32>
    %76 = vector.extract_strided_slice %75 {offsets = [0, 0], sizes = [2, 32], strides = [1, 1]} : vector<2x128xf32> to vector<2x32xf32>
    %77 = arith.negf %76 : vector<2x32xf32>
    %78 = math.exp %77 : vector<2x32xf32>
    %cst_46 = arith.constant 1.000000e+00 : f32
    %79 = vector.broadcast %cst_46 : f32 to vector<2x32xf32>
    %80 = arith.addf %79, %78 : vector<2x32xf32>
    %81 = arith.divf %79, %80 : vector<2x32xf32>
    %82 = vector.extract_strided_slice %75 {offsets = [0, 32], sizes = [2, 32], strides = [1, 1]} : vector<2x128xf32> to vector<2x32xf32>
    %83 = arith.negf %82 : vector<2x32xf32>
    %84 = math.exp %83 : vector<2x32xf32>
    %cst_47 = arith.constant 1.000000e+00 : f32
    %85 = vector.broadcast %cst_47 : f32 to vector<2x32xf32>
    %86 = arith.addf %85, %84 : vector<2x32xf32>
    %87 = arith.divf %85, %86 : vector<2x32xf32>
    %88 = vector.extract_strided_slice %75 {offsets = [0, 64], sizes = [2, 32], strides = [1, 1]} : vector<2x128xf32> to vector<2x32xf32>
    %89 = math.tanh %88 : vector<2x32xf32>
    %90 = vector.extract_strided_slice %75 {offsets = [0, 96], sizes = [2, 32], strides = [1, 1]} : vector<2x128xf32> to vector<2x32xf32>
    %91 = arith.negf %90 : vector<2x32xf32>
    %92 = math.exp %91 : vector<2x32xf32>
    %cst_48 = arith.constant 1.000000e+00 : f32
    %93 = vector.broadcast %cst_48 : f32 to vector<2x32xf32>
    %94 = arith.addf %93, %92 : vector<2x32xf32>
    %95 = arith.divf %93, %94 : vector<2x32xf32>
    %96 = arith.mulf %87, %63 : vector<2x32xf32>
    %97 = arith.mulf %81, %89 : vector<2x32xf32>
    %98 = arith.addf %96, %97 : vector<2x32xf32>
    %99 = math.tanh %98 : vector<2x32xf32>
    %100 = arith.mulf %95, %99 : vector<2x32xf32>
    %c2_i32 = arith.constant 2 : i32
    return
  }
  func.func @transform_0(%arg0: i32) -> (i32, i32, i32) {
    %c0_i32 = arith.constant 0 : i32
    %c0_i32_0 = arith.constant 0 : i32
    %c0_i32_1 = arith.constant 0 : i32
    %c0_i32_2 = arith.constant 0 : i32
    return %c0_i32, %c0_i32_0, %c0_i32_1 : i32, i32, i32
  }
  func.func @transform_1(%arg0: i32) -> (i32, i32, i32) {
    %c0_i32 = arith.constant 0 : i32
    %c0_i32_0 = arith.constant 0 : i32
    %c0_i32_1 = arith.constant 0 : i32
    %c0_i32_2 = arith.constant 0 : i32
    return %c0_i32, %c0_i32_0, %c0_i32_1 : i32, i32, i32
  }
  func.func @transform_2(%arg0: i32) -> (i32, i32, i32) {
    %c0_i32 = arith.constant 0 : i32
    %c0_i32_0 = arith.constant 0 : i32
    %c0_i32_1 = arith.constant 0 : i32
    %c0_i32_2 = arith.constant 0 : i32
    return %c0_i32, %c0_i32_0, %c0_i32_1 : i32, i32, i32
  }
  func.func @transform_3(%arg0: i32) -> (i32, i32, i32) {
    %c0_i32 = arith.constant 0 : i32
    %c0_i32_0 = arith.constant 0 : i32
    %c0_i32_1 = arith.constant 0 : i32
    %c0_i32_2 = arith.constant 0 : i32
    return %c0_i32, %c0_i32_0, %c0_i32_1 : i32, i32, i32
  }
  func.func @transform_4(%arg0: i32) -> (i32, i32, i32) {
    %c0_i32 = arith.constant 0 : i32
    %c0_i32_0 = arith.constant 0 : i32
    %c0_i32_1 = arith.constant 0 : i32
    return %arg0, %c0_i32, %c0_i32_0 : i32, i32, i32
  }
  func.func @transform_5(%arg0: i32) -> (i32, i32, i32) {
    %c0_i32 = arith.constant 0 : i32
    %c0_i32_0 = arith.constant 0 : i32
    %c0_i32_1 = arith.constant 0 : i32
    return %arg0, %c0_i32, %c0_i32_0 : i32, i32, i32
  }
  func.func @transform_6(%arg0: i32) -> (i32, i32, i32) {
    %c0_i32 = arith.constant 0 : i32
    %c0_i32_0 = arith.constant 0 : i32
    %c0_i32_1 = arith.constant 0 : i32
    return %arg0, %c0_i32, %c0_i32_0 : i32, i32, i32
  }
  func.func @transform_7(%arg0: i32) -> (i32, i32, i32) {
    %c0_i32 = arith.constant 0 : i32
    %c0_i32_0 = arith.constant 0 : i32
    %c0_i32_1 = arith.constant 0 : i32
    return %arg0, %c0_i32, %c0_i32_0 : i32, i32, i32
  }
  func.func @transform_8(%arg0: i32) -> (i32, i32, i32) {
    %c0_i32 = arith.constant 0 : i32
    %c0_i32_0 = arith.constant 0 : i32
    %c0_i32_1 = arith.constant 0 : i32
    return %arg0, %c0_i32, %c0_i32_0 : i32, i32, i32
  }
  func.func @transform_9(%arg0: i32) -> (i32, i32, i32) {
    %c0_i32 = arith.constant 0 : i32
    %c0_i32_0 = arith.constant 0 : i32
    %c0_i32_1 = arith.constant 0 : i32
    return %arg0, %c0_i32, %c0_i32_0 : i32, i32, i32
  }
  func.func @transform_10(%arg0: i32) -> (i32, i32, i32) {
    %c0_i32 = arith.constant 0 : i32
    %c0_i32_0 = arith.constant 0 : i32
    %c0_i32_1 = arith.constant 0 : i32
    return %arg0, %c0_i32, %c0_i32_0 : i32, i32, i32
  }
  func.func @transform_11(%arg0: i32) -> (i32, i32, i32) {
    %c0_i32 = arith.constant 0 : i32
    %c0_i32_0 = arith.constant 0 : i32
    %c0_i32_1 = arith.constant 0 : i32
    return %arg0, %c0_i32, %c0_i32_0 : i32, i32, i32
  }
  func.func @transform_12(%arg0: i32) -> (i32, i32, i32) {
    %c0_i32 = arith.constant 0 : i32
    %c0_i32_0 = arith.constant 0 : i32
    %c0_i32_1 = arith.constant 0 : i32
    return %arg0, %c0_i32, %c0_i32_0 : i32, i32, i32
  }
  func.func @transform_13(%arg0: i32) -> (i32, i32, i32, i32) {
    %c0_i32 = arith.constant 0 : i32
    %c0_i32_0 = arith.constant 0 : i32
    %c0_i32_1 = arith.constant 0 : i32
    %c0_i32_2 = arith.constant 0 : i32
    return %arg0, %c0_i32, %c0_i32_0, %c0_i32_1 : i32, i32, i32, i32
  }
  func.func @transform_14(%arg0: i32) -> (i32, i32, i32, i32) {
    %c0_i32 = arith.constant 0 : i32
    %c0_i32_0 = arith.constant 0 : i32
    %c0_i32_1 = arith.constant 0 : i32
    %c0_i32_2 = arith.constant 0 : i32
    return %arg0, %c0_i32, %c0_i32_0, %c0_i32_1 : i32, i32, i32, i32
  }
}

</mosaic_0001>

<llo_original>
// kernel: squeeze.5
$region0: #{squeeze.5}
  %s0 = inlined_call_operand.vmem [shape: f32[1,2,2,8], index: 0, kind: input, shape index: {}]
  %s1 = inlined_call_operand.vmem [shape: f32[2,2,4,2], index: 1, kind: output, shape index: {}]
  $region1: #{squeeze.5} parent=0
    #allocation0 [shape = 'u8[16384]{0}', space=vmem, size = 0x4000, scoped, tag = 'scoped mem for output reshape']
    #allocation1 [shape = 'u8[8192]{0}', space=vmem, size = 0x2000, scoped, tag = 'scoped mem for input reshape']
    %s3 = ssub.s32 4, 1
    %s4 = scalar_lea.vmem %s0, 2
    %v5 = vld [vmem:[%s4] sm:%s3]
    %s6 = scalar_lea.vmem [#allocation1], 8
    %7 = vst [vmem:[%s6] sm:%s3] %v5
    %v8 = vld [vmem:[%s0] sm:%s3]
    %9 = vst [vmem:[#allocation1] sm:%s3] %v8
    %v10 = vld [vmem:[#allocation1] sm:$0x3]
    %vm11 = vcmask 15360
    %12 = vst.msk [vmem:[#allocation0] ss:$8 sm:$0x3] %vm11, %v10
    %s13 = scalar_lea.vmem [#allocation1], 8
    %v14 = vld [vmem:[%s13] sm:$0x3]
    %vm15 = vcmask 15360
    %s16 = scalar_lea.vmem [#allocation0], 16
    %17 = vst.msk [vmem:[%s16] ss:$8 sm:$0x3] %vm15, %v14
    %v18 = vld.sshfl [vmem:[#allocation1] sm:$0xff pattern:$0x99999810]
    %19 = vrot.lane.b32.xlu0 %v18, 126
    %v20 = vpop.permute.xlu0 %19
    %vm21 = vcmask 15360
    %s22 = scalar_lea.vmem [#allocation0], 1
    %23 = vst.msk [vmem:[%s22] ss:$8 sm:$0xf] %vm21, %v20
    %v24 = vld.sshfl [vmem:[#allocation1] sm:$0xff pattern:$0x99999810]
    %25 = vrot.lane.b32.xlu0 %v24, 124
    %v26 = vpop.permute.xlu0 %25
    %vm27 = vcmask 15360
    %s28 = scalar_lea.vmem [#allocation0], 2
    %29 = vst.msk [vmem:[%s28] ss:$8 sm:$0xf] %vm27, %v26
    %v30 = vld.sshfl [vmem:[#allocation1] sm:$0xff pattern:$0x99999810]
    %31 = vrot.lane.b32.xlu0 %v30, 122
    %v32 = vpop.permute.xlu0 %31
    %vm33 = vcmask 15360
    %s34 = scalar_lea.vmem [#allocation0], 3
    %35 = vst.msk [vmem:[%s34] ss:$8 sm:$0xf] %vm33, %v32
    %s37 = ssub.s32 16, 1
    %v38 = vld [vmem:[#allocation0] sm:%s37]
    %s40 = ssub.s32 16, 1
    %41 = vst [vmem:[%s1] sm:%s40] %v38
    %s42 = scalar_lea.vmem [#allocation0], 8
    %v43 = vld [vmem:[%s42] sm:%s37]
    %s45 = ssub.s32 16, 1
    %s46 = scalar_lea.vmem %s1, 4
    %47 = vst [vmem:[%s46] sm:%s45] %v43
    %s48 = scalar_lea.vmem [#allocation0], 16
    %v49 = vld [vmem:[%s48] sm:%s37]
    %s51 = ssub.s32 16, 1
    %s52 = scalar_lea.vmem %s1, 8
    %53 = vst [vmem:[%s52] sm:%s51] %v49
    %s54 = scalar_lea.vmem [#allocation0], 24
    %v55 = vld [vmem:[%s54] sm:%s37]
    %s57 = ssub.s32 16, 1
    %s58 = scalar_lea.vmem %s1, 12
    %59 = vst [vmem:[%s58] sm:%s57] %v55

// kernel: brits_forward.1
$region0: #{brits_forward.1}
  #allocation0 [shape = 'u32[]', space=smem, size = 0x4, offset = 0x4, fixed_abs, tag = 'smem constant byte address 0x4 - core index']
  #allocation1 [shape = 'u32[72,128]{1,0:T(1,128)}', space=vmem, size = 0x9000, scoped, tag = 'internal scratch']
  %s0 = inlined_call_operand.vmem [shape: f32[8,2,8], index: 0, kind: input, shape index: {}]
  %s1 = inlined_call_operand.vmem [shape: f32[8,2,8], index: 1, kind: input, shape index: {}]
  %s2 = inlined_call_operand.vmem [shape: f32[8,2,8], index: 2, kind: input, shape index: {}]
  %s3 = inlined_call_operand.vmem [shape: f32[8,2,8], index: 3, kind: input, shape index: {}]
  %s4 = inlined_call_operand.vmem [shape: f32[2,8,32], index: 4, kind: input, shape index: {}]
  %s5 = inlined_call_operand.vmem [shape: f32[2,1,32], index: 5, kind: input, shape index: {}]
  %s6 = inlined_call_operand.vmem [shape: f32[2,32,8], index: 6, kind: input, shape index: {}]
  %s7 = inlined_call_operand.vmem [shape: f32[2,1,8], index: 7, kind: input, shape index: {}]
  %s8 = inlined_call_operand.vmem [shape: f32[2,8,128], index: 8, kind: input, shape index: {}]
  %s9 = inlined_call_operand.vmem [shape: f32[2,8,128], index: 9, kind: input, shape index: {}]
  %s10 = inlined_call_operand.vmem [shape: f32[2,32,128], index: 10, kind: input, shape index: {}]
  %s11 = inlined_call_operand.vmem [shape: f32[2,1,128], index: 11, kind: input, shape index: {}]
  %s12 = inlined_call_operand.vmem [shape: f32[2,1,128], index: 12, kind: input, shape index: {}]
  %s13 = inlined_call_operand.vmem [shape: f32[2,8,2,8], index: 13, kind: output, shape index: {0}]
  %s14 = inlined_call_operand.vmem [shape: f32[2,2,2,8], index: 14, kind: output, shape index: {1}]
  %15 = xla_tuple %s13, %s14
  %s16 = sld [smem:[#allocation0]]
  $region100: #{brits_forward.1} parent=0
    _
  %s18 = ssub.s32 1, %s16
  %s19 = scalar_select 0, %s18, %s16
  loop: start=0, step=1, limit=4
  $region2: #{brits_forward.1} parent=0 // loop_pre_header
    _
  $region3: #{brits_forward.1} parent=0 // loop_header
    %s21 = sphi 0, %s25
    %p22 = scmp.ge.s32.totalorder %s21, 4
    %s29 = sphi 0, %s29
    %s31 = sphi 0, %s29
    %s32 = sphi 0, %s31
    %s46 = sphi 0, %s32
    %s50 = sphi 0, %s50
    %s52 = sphi 0, %s50
    %s53 = sphi 0, %s52
    %s67 = sphi 0, %s53
    %s71 = sphi 0, %s71
    %s73 = sphi 0, %s71
    %s74 = sphi 0, %s73
    %s88 = sphi 0, %s74
    %s92 = sphi 0, %s92
    %s94 = sphi 0, %s92
    %s95 = sphi 0, %s94
    %s109 = sphi 0, %s95
    %s115 = sphi 0, %s117
    %s118 = sphi 0, %s115
    %s119 = sphi 0, %s118
    %s135 = sphi 0, %s119
    %s141 = sphi 0, %s143
    %s144 = sphi 0, %s141
    %s145 = sphi 0, %s144
    %s161 = sphi 0, %s145
    %s167 = sphi 0, %s169
    %s170 = sphi 0, %s167
    %s171 = sphi 0, %s170
    %s187 = sphi 0, %s171
    %s193 = sphi 0, %s195
    %s196 = sphi 0, %s193
    %s197 = sphi 0, %s196
    %s213 = sphi 0, %s197
    %s219 = sphi 0, %s221
    %s222 = sphi 0, %s219
    %s223 = sphi 0, %s222
    %s239 = sphi 0, %s223
    %s245 = sphi 0, %s247
    %s248 = sphi 0, %s245
    %s249 = sphi 0, %s248
    %s265 = sphi 0, %s249
    %s271 = sphi 0, %s273
    %s274 = sphi 0, %s271
    %s275 = sphi 0, %s274
    %s291 = sphi 0, %s275
    %s297 = sphi 0, %s299
    %s300 = sphi 0, %s297
    %s301 = sphi 0, %s300
    %s317 = sphi 0, %s301
    %s323 = sphi 0, %s325
    %s326 = sphi 0, %s323
    %s327 = sphi 0, %s326
    %s343 = sphi 0, %s327
    %s349 = sphi 0, %s351
    %s352 = sphi 0, %s349
    %s353 = sphi 0, %s352
    %s369 = sphi 0, %s353
    %s375 = sphi 0, %s377
    %s378 = sphi 0, %s375
    %s379 = sphi 0, %s378
    %s395 = sphi 0, %s379
  $region4: #{brits_forward.1} parent=0 // loop_header_branch
    %24 = sbr.rel (%p22) target = $region8
  $region5: #{brits_forward.1} parent=0 // loop_body
    %s26 = ssub.s32 %s21, 1
    %s27 = ssub.s32 %s21, 2
    %s28 = sadd.s32 %s21, 1
    %s30 = sadd.s32 %s29, 1
    %p33 = scmp.eq.s32.totalorder %s21, 1
    %p34 = scmp.ne.s32.totalorder %s29, %s31
    %p35 = scmp.eq.s32.totalorder %s21, 0
    %p36 = por %p34, %p35
    %p37 = scmp.ne.s32.totalorder %s29, %s31
    %p38 = scmp.eq.s32.totalorder %s26, 1
    %p39 = por %p37, %p38
    %p40 = scmp.ne.s32.totalorder %s31, %s32
    %p41 = scmp.eq.s32.totalorder %s26, 0
    %p42 = por %p40, %p41
    %p43 = scmp.ne.s32.totalorder %s31, %s32
    %p44 = scmp.eq.s32.totalorder %s27, 1
    %p45 = por %p43, %p44
    %p47 = scmp.ne.s32.totalorder %s32, %s46
    %p48 = scmp.eq.s32.totalorder %s27, 0
    %p49 = por %p47, %p48
    %s51 = sadd.s32 %s50, 1
    %p54 = scmp.eq.s32.totalorder %s21, 1
    %p55 = scmp.ne.s32.totalorder %s50, %s52
    %p56 = scmp.eq.s32.totalorder %s21, 0
    %p57 = por %p55, %p56
    %p58 = scmp.ne.s32.totalorder %s50, %s52
    %p59 = scmp.eq.s32.totalorder %s26, 1
    %p60 = por %p58, %p59
    %p61 = scmp.ne.s32.totalorder %s52, %s53
    %p62 = scmp.eq.s32.totalorder %s26, 0
    %p63 = por %p61, %p62
    %p64 = scmp.ne.s32.totalorder %s52, %s53
    %p65 = scmp.eq.s32.totalorder %s27, 1
    %p66 = por %p64, %p65
    %p68 = scmp.ne.s32.totalorder %s53, %s67
    %p69 = scmp.eq.s32.totalorder %s27, 0
    %p70 = por %p68, %p69
    %s72 = sadd.s32 %s71, 1
    %p75 = scmp.eq.s32.totalorder %s21, 1
    %p76 = scmp.ne.s32.totalorder %s71, %s73
    %p77 = scmp.eq.s32.totalorder %s21, 0
    %p78 = por %p76, %p77
    %p79 = scmp.ne.s32.totalorder %s71, %s73
    %p80 = scmp.eq.s32.totalorder %s26, 1
    %p81 = por %p79, %p80
    %p82 = scmp.ne.s32.totalorder %s73, %s74
    %p83 = scmp.eq.s32.totalorder %s26, 0
    %p84 = por %p82, %p83
    %p85 = scmp.ne.s32.totalorder %s73, %s74
    %p86 = scmp.eq.s32.totalorder %s27, 1
    %p87 = por %p85, %p86
    %p89 = scmp.ne.s32.totalorder %s74, %s88
    %p90 = scmp.eq.s32.totalorder %s27, 0
    %p91 = por %p89, %p90
    %s93 = sadd.s32 %s92, 1
    %p96 = scmp.eq.s32.totalorder %s21, 1
    %p97 = scmp.ne.s32.totalorder %s92, %s94
    %p98 = scmp.eq.s32.totalorder %s21, 0
    %p99 = por %p97, %p98
    %p100 = scmp.ne.s32.totalorder %s92, %s94
    %p101 = scmp.eq.s32.totalorder %s26, 1
    %p102 = por %p100, %p101
    %p103 = scmp.ne.s32.totalorder %s94, %s95
    %p104 = scmp.eq.s32.totalorder %s26, 0
    %p105 = por %p103, %p104
    %p106 = scmp.ne.s32.totalorder %s94, %s95
    %p107 = scmp.eq.s32.totalorder %s27, 1
    %p108 = por %p106, %p107
    %p110 = scmp.ne.s32.totalorder %s95, %s109
    %p111 = scmp.eq.s32.totalorder %s27, 0
    %p112 = por %p110, %p111
    %s113 = ssub.s32 %s21, %s28
    %p114 = scmp.eq.s32.totalorder %s113, 0
    %s116 = sadd.s32 %s115, 1
    %s117 = scalar_select %p114, %s115, %s116
    %p120 = pneg %p114
    %p121 = scmp.eq.s32.totalorder %s21, 1
    %p122 = por %p120, %p121
    %p123 = scmp.ne.s32.totalorder %s115, %s118
    %p124 = scmp.eq.s32.totalorder %s21, 0
    %p125 = por %p123, %p124
    %p126 = scmp.ne.s32.totalorder %s115, %s118
    %p127 = scmp.eq.s32.totalorder %s26, 1
    %p128 = por %p126, %p127
    %p129 = scmp.ne.s32.totalorder %s118, %s119
    %p130 = scmp.eq.s32.totalorder %s26, 0
    %p131 = por %p129, %p130
    %p132 = scmp.ne.s32.totalorder %s118, %s119
    %p133 = scmp.eq.s32.totalorder %s27, 1
    %p134 = por %p132, %p133
    %p136 = scmp.ne.s32.totalorder %s119, %s135
    %p137 = scmp.eq.s32.totalorder %s27, 0
    %p138 = por %p136, %p137
    %s139 = ssub.s32 %s21, %s28
    %p140 = scmp.eq.s32.totalorder %s139, 0
    %s142 = sadd.s32 %s141, 1
    %s143 = scalar_select %p140, %s141, %s142
    %p146 = pneg %p140
    %p147 = scmp.eq.s32.totalorder %s21, 1
    %p148 = por %p146, %p147
    %p149 = scmp.ne.s32.totalorder %s141, %s144
    %p150 = scmp.eq.s32.totalorder %s21, 0
    %p151 = por %p149, %p150
    %p152 = scmp.ne.s32.totalorder %s141, %s144
    %p153 = scmp.eq.s32.totalorder %s26, 1
    %p154 = por %p152, %p153
    %p155 = scmp.ne.s32.totalorder %s144, %s145
    %p156 = scmp.eq.s32.totalorder %s26, 0
    %p157 = por %p155, %p156
    %p158 = scmp.ne.s32.totalorder %s144, %s145
    %p159 = scmp.eq.s32.totalorder %s27, 1
    %p160 = por %p158, %p159
    %p162 = scmp.ne.s32.totalorder %s145, %s161
    %p163 = scmp.eq.s32.totalorder %s27, 0
    %p164 = por %p162, %p163
    %s165 = ssub.s32 %s21, %s28
    %p166 = scmp.eq.s32.totalorder %s165, 0
    %s168 = sadd.s32 %s167, 1
    %s169 = scalar_select %p166, %s167, %s168
    %p172 = pneg %p166
    %p173 = scmp.eq.s32.totalorder %s21, 1
    %p174 = por %p172, %p173
    %p175 = scmp.ne.s32.totalorder %s167, %s170
    %p176 = scmp.eq.s32.totalorder %s21, 0
    %p177 = por %p175, %p176
    %p178 = scmp.ne.s32.totalorder %s167, %s170
    %p179 = scmp.eq.s32.totalorder %s26, 1
    %p180 = por %p178, %p179
    %p181 = scmp.ne.s32.totalorder %s170, %s171
    %p182 = scmp.eq.s32.totalorder %s26, 0
    %p183 = por %p181, %p182
    %p184 = scmp.ne.s32.totalorder %s170, %s171
    %p185 = scmp.eq.s32.totalorder %s27, 1
    %p186 = por %p184, %p185
    %p188 = scmp.ne.s32.totalorder %s171, %s187
    %p189 = scmp.eq.s32.totalorder %s27, 0
    %p190 = por %p188, %p189
    %s191 = ssub.s32 %s21, %s28
    %p192 = scmp.eq.s32.totalorder %s191, 0
    %s194 = sadd.s32 %s193, 1
    %s195 = scalar_select %p192, %s193, %s194
    %p198 = pneg %p192
    %p199 = scmp.eq.s32.totalorder %s21, 1
    %p200 = por %p198, %p199
    %p201 = scmp.ne.s32.totalorder %s193, %s196
    %p202 = scmp.eq.s32.totalorder %s21, 0
    %p203 = por %p201, %p202
    %p204 = scmp.ne.s32.totalorder %s193, %s196
    %p205 = scmp.eq.s32.totalorder %s26, 1
    %p206 = por %p204, %p205
    %p207 = scmp.ne.s32.totalorder %s196, %s197
    %p208 = scmp.eq.s32.totalorder %s26, 0
    %p209 = por %p207, %p208
    %p210 = scmp.ne.s32.totalorder %s196, %s197
    %p211 = scmp.eq.s32.totalorder %s27, 1
    %p212 = por %p210, %p211
    %p214 = scmp.ne.s32.totalorder %s197, %s213
    %p215 = scmp.eq.s32.totalorder %s27, 0
    %p216 = por %p214, %p215
    %s217 = ssub.s32 %s21, %s28
    %p218 = scmp.eq.s32.totalorder %s217, 0
    %s220 = sadd.s32 %s219, 1
    %s221 = scalar_select %p218, %s219, %s220
    %p224 = pneg %p218
    %p225 = scmp.eq.s32.totalorder %s21, 1
    %p226 = por %p224, %p225
    %p227 = scmp.ne.s32.totalorder %s219, %s222
    %p228 = scmp.eq.s32.totalorder %s21, 0
    %p229 = por %p227, %p228
    %p230 = scmp.ne.s32.totalorder %s219, %s222
    %p231 = scmp.eq.s32.totalorder %s26, 1
    %p232 = por %p230, %p231
    %p233 = scmp.ne.s32.totalorder %s222, %s223
    %p234 = scmp.eq.s32.totalorder %s26, 0
    %p235 = por %p233, %p234
    %p236 = scmp.ne.s32.totalorder %s222, %s223
    %p237 = scmp.eq.s32.totalorder %s27, 1
    %p238 = por %p236, %p237
    %p240 = scmp.ne.s32.totalorder %s223, %s239
    %p241 = scmp.eq.s32.totalorder %s27, 0
    %p242 = por %p240, %p241
    %s243 = ssub.s32 %s21, %s28
    %p244 = scmp.eq.s32.totalorder %s243, 0
    %s246 = sadd.s32 %s245, 1
    %s247 = scalar_select %p244, %s245, %s246
    %p250 = pneg %p244
    %p251 = scmp.eq.s32.totalorder %s21, 1
    %p252 = por %p250, %p251
    %p253 = scmp.ne.s32.totalorder %s245, %s248
    %p254 = scmp.eq.s32.totalorder %s21, 0
    %p255 = por %p253, %p254
    %p256 = scmp.ne.s32.totalorder %s245, %s248
    %p257 = scmp.eq.s32.totalorder %s26, 1
    %p258 = por %p256, %p257
    %p259 = scmp.ne.s32.totalorder %s248, %s249
    %p260 = scmp.eq.s32.totalorder %s26, 0
    %p261 = por %p259, %p260
    %p262 = scmp.ne.s32.totalorder %s248, %s249
    %p263 = scmp.eq.s32.totalorder %s27, 1
    %p264 = por %p262, %p263
    %p266 = scmp.ne.s32.totalorder %s249, %s265
    %p267 = scmp.eq.s32.totalorder %s27, 0
    %p268 = por %p266, %p267
    %s269 = ssub.s32 %s21, %s28
    %p270 = scmp.eq.s32.totalorder %s269, 0
    %s272 = sadd.s32 %s271, 1
    %s273 = scalar_select %p270, %s271, %s272
    %p276 = pneg %p270
    %p277 = scmp.eq.s32.totalorder %s21, 1
    %p278 = por %p276, %p277
    %p279 = scmp.ne.s32.totalorder %s271, %s274
    %p280 = scmp.eq.s32.totalorder %s21, 0
    %p281 = por %p279, %p280
    %p282 = scmp.ne.s32.totalorder %s271, %s274
    %p283 = scmp.eq.s32.totalorder %s26, 1
    %p284 = por %p282, %p283
    %p285 = scmp.ne.s32.totalorder %s274, %s275
    %p286 = scmp.eq.s32.totalorder %s26, 0
    %p287 = por %p285, %p286
    %p288 = scmp.ne.s32.totalorder %s274, %s275
    %p289 = scmp.eq.s32.totalorder %s27, 1
    %p290 = por %p288, %p289
    %p292 = scmp.ne.s32.totalorder %s275, %s291
    %p293 = scmp.eq.s32.totalorder %s27, 0
    %p294 = por %p292, %p293
    %s295 = ssub.s32 %s21, %s28
    %p296 = scmp.eq.s32.totalorder %s295, 0
    %s298 = sadd.s32 %s297, 1
    %s299 = scalar_select %p296, %s297, %s298
    %p302 = pneg %p296
    %p303 = scmp.eq.s32.totalorder %s21, 1
    %p304 = por %p302, %p303
    %p305 = scmp.ne.s32.totalorder %s297, %s300
    %p306 = scmp.eq.s32.totalorder %s21, 0
    %p307 = por %p305, %p306
    %p308 = scmp.ne.s32.totalorder %s297, %s300
    %p309 = scmp.eq.s32.totalorder %s26, 1
    %p310 = por %p308, %p309
    %p311 = scmp.ne.s32.totalorder %s300, %s301
    %p312 = scmp.eq.s32.totalorder %s26, 0
    %p313 = por %p311, %p312
    %p314 = scmp.ne.s32.totalorder %s300, %s301
    %p315 = scmp.eq.s32.totalorder %s27, 1
    %p316 = por %p314, %p315
    %p318 = scmp.ne.s32.totalorder %s301, %s317
    %p319 = scmp.eq.s32.totalorder %s27, 0
    %p320 = por %p318, %p319
    %s321 = ssub.s32 %s21, %s28
    %p322 = scmp.eq.s32.totalorder %s321, 0
    %s324 = sadd.s32 %s323, 1
    %s325 = scalar_select %p322, %s323, %s324
    %p328 = pneg %p322
    %p329 = scmp.eq.s32.totalorder %s21, 1
    %p330 = por %p328, %p329
    %p331 = scmp.ne.s32.totalorder %s323, %s326
    %p332 = scmp.eq.s32.totalorder %s21, 0
    %p333 = por %p331, %p332
    %p334 = scmp.ne.s32.totalorder %s323, %s326
    %p335 = scmp.eq.s32.totalorder %s26, 1
    %p336 = por %p334, %p335
    %p337 = scmp.ne.s32.totalorder %s326, %s327
    %p338 = scmp.eq.s32.totalorder %s26, 0
    %p339 = por %p337, %p338
    %p340 = scmp.ne.s32.totalorder %s326, %s327
    %p341 = scmp.eq.s32.totalorder %s27, 1
    %p342 = por %p340, %p341
    %p344 = scmp.ne.s32.totalorder %s327, %s343
    %p345 = scmp.eq.s32.totalorder %s27, 0
    %p346 = por %p344, %p345
    %s347 = ssub.s32 %s21, %s28
    %p348 = scmp.eq.s32.totalorder %s347, 0
    %s350 = sadd.s32 %s349, 1
    %s351 = scalar_select %p348, %s349, %s350
    %p354 = pneg %p348
    %p355 = scmp.eq.s32.totalorder %s21, 1
    %p356 = por %p354, %p355
    %p357 = scmp.ne.s32.totalorder %s349, %s352
    %p358 = scmp.eq.s32.totalorder %s21, 0
    %p359 = por %p357, %p358
    %p360 = scmp.ne.s32.totalorder %s349, %s352
    %p361 = scmp.eq.s32.totalorder %s26, 1
    %p362 = por %p360, %p361
    %p363 = scmp.ne.s32.totalorder %s352, %s353
    %p364 = scmp.eq.s32.totalorder %s26, 0
    %p365 = por %p363, %p364
    %p366 = scmp.ne.s32.totalorder %s352, %s353
    %p367 = scmp.eq.s32.totalorder %s27, 1
    %p368 = por %p366, %p367
    %p370 = scmp.ne.s32.totalorder %s353, %s369
    %p371 = scmp.eq.s32.totalorder %s27, 0
    %p372 = por %p370, %p371
    %s373 = ssub.s32 %s21, %s28
    %p374 = scmp.eq.s32.totalorder %s373, 0
    %s376 = sadd.s32 %s375, 1
    %s377 = scalar_select %p374, %s375, %s376
    %p380 = pneg %p374
    %p381 = scmp.eq.s32.totalorder %s21, 1
    %p382 = por %p380, %p381
    %p383 = scmp.ne.s32.totalorder %s375, %s378
    %p384 = scmp.eq.s32.totalorder %s21, 0
    %p385 = por %p383, %p384
    %p386 = scmp.ne.s32.totalorder %s375, %s378
    %p387 = scmp.eq.s32.totalorder %s26, 1
    %p388 = por %p386, %p387
    %p389 = scmp.ne.s32.totalorder %s378, %s379
    %p390 = scmp.eq.s32.totalorder %s26, 0
    %p391 = por %p389, %p390
    %p392 = scmp.ne.s32.totalorder %s378, %s379
    %p393 = scmp.eq.s32.totalorder %s27, 1
    %p394 = por %p392, %p393
    %p396 = scmp.ne.s32.totalorder %s379, %s395
    %p397 = scmp.eq.s32.totalorder %s27, 0
    %p398 = por %p396, %p397
    %p399 = scmp.le.s32.totalorder 1, %s21
    %p400 = scmp.lt.s32.totalorder %s21, 3
    %p401 = pnand %p399, %p400
    %p402 = pneg %p401
    // Predicated region
    $region9: #{brits_forward.1} parent=5 // pred_check
      _
    $region10: #{brits_forward.1} parent=5 // pred_check_branch
      %404 = sbr.rel (%p401) target = $region12
    $region11: #{brits_forward.1} parent=5 // pred_region
      %s405 = ssub.s32 %s21, 1
      // Predicated region
      $region13: #{brits_forward.1} parent=11 // pred_check
        %p406 = pneg %p42
      $region14: #{brits_forward.1} parent=11 // pred_check_branch
        %408 = sbr.rel (%p406) target = $region16
      $region15: #{brits_forward.1} parent=11 // pred_region
        _
      $region16: #{brits_forward.1} parent=11 // pred_fallthru
        _
      // Predicated region
      $region17: #{brits_forward.1} parent=11 // pred_check
        %p409 = pneg %p63
      $region18: #{brits_forward.1} parent=11 // pred_check_branch
        %411 = sbr.rel (%p409) target = $region20
      $region19: #{brits_forward.1} parent=11 // pred_region
        _
      $region20: #{brits_forward.1} parent=11 // pred_fallthru
        _
      // Predicated region
      $region21: #{brits_forward.1} parent=11 // pred_check
        %p412 = pneg %p84
      $region22: #{brits_forward.1} parent=11 // pred_check_branch
        %414 = sbr.rel (%p412) target = $region24
      $region23: #{brits_forward.1} parent=11 // pred_region
        _
      $region24: #{brits_forward.1} parent=11 // pred_fallthru
        _
      // Predicated region
      $region25: #{brits_forward.1} parent=11 // pred_check
        %p415 = pneg %p105
      $region26: #{brits_forward.1} parent=11 // pred_check_branch
        %417 = sbr.rel (%p415) target = $region28
      $region27: #{brits_forward.1} parent=11 // pred_region
        _
      $region28: #{brits_forward.1} parent=11 // pred_fallthru
        _
    $region12: #{brits_forward.1} parent=5 // pred_fallthru
      _
    %p418 = scmp.lt.s32.totalorder %s21, 2
    // Predicated region
    $region29: #{brits_forward.1} parent=5 // pred_check
      %p419 = pneg %p418
    $region30: #{brits_forward.1} parent=5 // pred_check_branch
      %421 = sbr.rel (%p419) target = $region32
    $region31: #{brits_forward.1} parent=5 // pred_region
      // Predicated region
      $region33: #{brits_forward.1} parent=31 // pred_check
        %p422 = pneg %p125
      $region34: #{brits_forward.1} parent=31 // pred_check_branch
        %424 = sbr.rel (%p422) target = $region36
      $region35: #{brits_forward.1} parent=31 // pred_region
        %p425 = scmp.lt.s32.totalorder %s21, 1
        %s426 = scalar_select %p425, %s21, 1
        %s427 = smul.addr %s426, 8
        %s428 = scalar_lea.vmem %s4, %s427
      $region36: #{brits_forward.1} parent=31 // pred_fallthru
        _
      // Predicated region
      $region37: #{brits_forward.1} parent=31 // pred_check
        %p429 = pneg %p151
      $region38: #{brits_forward.1} parent=31 // pred_check_branch
        %431 = sbr.rel (%p429) target = $region40
      $region39: #{brits_forward.1} parent=31 // pred_region
        %p432 = scmp.lt.s32.totalorder %s21, 1
        %s433 = scalar_select %p432, %s21, 1
        %s434 = scalar_lea.vmem %s5, %s433
      $region40: #{brits_forward.1} parent=31 // pred_fallthru
        _
      // Predicated region
      $region41: #{brits_forward.1} parent=31 // pred_check
        %p435 = pneg %p177
      $region42: #{brits_forward.1} parent=31 // pred_check_branch
        %437 = sbr.rel (%p435) target = $region44
      $region43: #{brits_forward.1} parent=31 // pred_region
        %p438 = scmp.lt.s32.totalorder %s21, 1
        %s439 = scalar_select %p438, %s21, 1
        %s440 = smul.addr %s439, 4
        %s441 = smul.addr %s440, 8
        %s442 = scalar_lea.vmem %s6, %s441
      $region44: #{brits_forward.1} parent=31 // pred_fallthru
        _
      // Predicated region
      $region45: #{brits_forward.1} parent=31 // pred_check
        %p443 = pneg %p203
      $region46: #{brits_forward.1} parent=31 // pred_check_branch
        %445 = sbr.rel (%p443) target = $region48
      $region47: #{brits_forward.1} parent=31 // pred_region
        %p446 = scmp.lt.s32.totalorder %s21, 1
        %s447 = scalar_select %p446, %s21, 1
        %s448 = scalar_lea.vmem %s7, %s447
      $region48: #{brits_forward.1} parent=31 // pred_fallthru
        _
      // Predicated region
      $region49: #{brits_forward.1} parent=31 // pred_check
        %p449 = pneg %p229
      $region50: #{brits_forward.1} parent=31 // pred_check_branch
        %451 = sbr.rel (%p449) target = $region52
      $region51: #{brits_forward.1} parent=31 // pred_region
        %p452 = scmp.lt.s32.totalorder %s21, 1
        %s453 = scalar_select %p452, %s21, 1
        %s454 = smul.addr %s453, 8
        %s455 = scalar_lea.vmem %s8, %s454
      $region52: #{brits_forward.1} parent=31 // pred_fallthru
        _
      // Predicated region
      $region53: #{brits_forward.1} parent=31 // pred_check
        %p456 = pneg %p255
      $region54: #{brits_forward.1} parent=31 // pred_check_branch
        %458 = sbr.rel (%p456) target = $region56
      $region55: #{brits_forward.1} parent=31 // pred_region
        %p459 = scmp.lt.s32.totalorder %s21, 1
        %s460 = scalar_select %p459, %s21, 1
        %s461 = smul.addr %s460, 8
        %s462 = scalar_lea.vmem %s9, %s461
      $region56: #{brits_forward.1} parent=31 // pred_fallthru
        _
      // Predicated region
      $region57: #{brits_forward.1} parent=31 // pred_check
        %p463 = pneg %p281
      $region58: #{brits_forward.1} parent=31 // pred_check_branch
        %465 = sbr.rel (%p463) target = $region60
      $region59: #{brits_forward.1} parent=31 // pred_region
        %p466 = scmp.lt.s32.totalorder %s21, 1
        %s467 = scalar_select %p466, %s21, 1
        %s468 = smul.addr %s467, 4
        %s469 = smul.addr %s468, 8
        %s470 = scalar_lea.vmem %s10, %s469
      $region60: #{brits_forward.1} parent=31 // pred_fallthru
        _
      // Predicated region
      $region61: #{brits_forward.1} parent=31 // pred_check
        %p471 = pneg %p307
      $region62: #{brits_forward.1} parent=31 // pred_check_branch
        %473 = sbr.rel (%p471) target = $region64
      $region63: #{brits_forward.1} parent=31 // pred_region
        %p474 = scmp.lt.s32.totalorder %s21, 1
        %s475 = scalar_select %p474, %s21, 1
        %s476 = scalar_lea.vmem %s11, %s475
      $region64: #{brits_forward.1} parent=31 // pred_fallthru
        _
      // Predicated region
      $region65: #{brits_forward.1} parent=31 // pred_check
        %p477 = pneg %p333
      $region66: #{brits_forward.1} parent=31 // pred_check_branch
        %479 = sbr.rel (%p477) target = $region68
      $region67: #{brits_forward.1} parent=31 // pred_region
        %p480 = scmp.lt.s32.totalorder %s21, 1
        %s481 = scalar_select %p480, %s21, 1
        %s482 = scalar_lea.vmem %s12, %s481
      $region68: #{brits_forward.1} parent=31 // pred_fallthru
        _
    $region32: #{brits_forward.1} parent=5 // pred_fallthru
      _
    %p483 = scmp.le.s32.totalorder 1, %s21
    %p484 = scmp.lt.s32.totalorder %s21, 3
    %p485 = pnand %p483, %p484
    %p486 = pneg %p485
    // Predicated region
    $region69: #{brits_forward.1} parent=5 // pred_check
      _
    $region70: #{brits_forward.1} parent=5 // pred_check_branch
      %488 = sbr.rel (%p485) target = $region72
    $region71: #{brits_forward.1} parent=5 // pred_region
      %s489 = ssub.s32 %s21, 1
      %p490 = pneg %p42
      %p491 = pneg %p39
      %p492 = pneg %p63
      %p493 = pneg %p60
      %p494 = pneg %p84
      %p495 = pneg %p81
      %p496 = pneg %p105
      %p497 = pneg %p102
      %p498 = scmp.lt.s32.totalorder %s26, 1
      %s499 = scalar_select %p498, %s26, 1
      %s500 = smul.addr %s499, 8
      %s501 = scalar_lea.vmem %s4, %s500
      %p502 = pneg %p131
      %p503 = pneg %p128
      %p504 = scmp.lt.s32.totalorder %s26, 1
      %s505 = scalar_select %p504, %s26, 1
      %s506 = scalar_lea.vmem %s5, %s505
      %p507 = pneg %p157
      %p508 = pneg %p154
      %p509 = scmp.lt.s32.totalorder %s26, 1
      %s510 = scalar_select %p509, %s26, 1
      %s511 = smul.addr %s510, 4
      %s512 = smul.addr %s511, 8
      %s513 = scalar_lea.vmem %s6, %s512
      %p514 = pneg %p183
      %p515 = pneg %p180
      %p516 = scmp.lt.s32.totalorder %s26, 1
      %s517 = scalar_select %p516, %s26, 1
      %s518 = scalar_lea.vmem %s7, %s517
      %p519 = pneg %p209
      %p520 = pneg %p206
      %p521 = scmp.lt.s32.totalorder %s26, 1
      %s522 = scalar_select %p521, %s26, 1
      %s523 = smul.addr %s522, 8
      %s524 = scalar_lea.vmem %s8, %s523
      %p525 = pneg %p235
      %p526 = pneg %p232
      %p527 = scmp.lt.s32.totalorder %s26, 1
      %s528 = scalar_select %p527, %s26, 1
      %s529 = smul.addr %s528, 8
      %s530 = scalar_lea.vmem %s9, %s529
      %p531 = pneg %p261
      %p532 = pneg %p258
      %p533 = scmp.lt.s32.totalorder %s26, 1
      %s534 = scalar_select %p533, %s26, 1
      %s535 = smul.addr %s534, 4
      %s536 = smul.addr %s535, 8
      %s537 = scalar_lea.vmem %s10, %s536
      %p538 = pneg %p287
      %p539 = pneg %p284
      %p540 = scmp.lt.s32.totalorder %s26, 1
      %s541 = scalar_select %p540, %s26, 1
      %s542 = scalar_lea.vmem %s11, %s541
      %p543 = pneg %p313
      %p544 = pneg %p310
      %p545 = scmp.lt.s32.totalorder %s26, 1
      %s546 = scalar_select %p545, %s26, 1
      %s547 = scalar_lea.vmem %s12, %s546
      %p548 = pneg %p339
      %p549 = pneg %p336
      %p550 = pneg %p365
      %p551 = pneg %p362
      %p552 = scmp.lt.s32.totalorder %s26, 1
      %s553 = scalar_select %p552, %s26, 1
      %s554 = smul.addr %s553, 8
      %s555 = smul.addr %s554, 2
      %s556 = scalar_lea.vmem %s13, %s555
      %p557 = pneg %p391
      %p558 = pneg %p388
      %p559 = scmp.lt.s32.totalorder %s26, 1
      %s560 = scalar_select %p559, %s26, 1
      %s561 = smul.addr %s560, 2
      %s562 = smul.addr %s561, 2
      %s563 = scalar_lea.vmem %s14, %s562
      %p564 = scmp.lt.s32.totalorder %s26, 1
      %s565 = scalar_select %p564, %s26, 1
      %s566 = smul.addr %s565, 8
      %s567 = scalar_lea.vmem %s4, %s566
      %p568 = scmp.lt.s32.totalorder %s26, 1
      %s569 = scalar_select %p568, %s26, 1
      %s570 = scalar_lea.vmem %s5, %s569
      %p571 = scmp.lt.s32.totalorder %s26, 1
      %s572 = scalar_select %p571, %s26, 1
      %s573 = smul.addr %s572, 4
      %s574 = smul.addr %s573, 8
      %s575 = scalar_lea.vmem %s6, %s574
      %p576 = scmp.lt.s32.totalorder %s26, 1
      %s577 = scalar_select %p576, %s26, 1
      %s578 = scalar_lea.vmem %s7, %s577
      %p579 = scmp.lt.s32.totalorder %s26, 1
      %s580 = scalar_select %p579, %s26, 1
      %s581 = smul.addr %s580, 8
      %s582 = scalar_lea.vmem %s8, %s581
      %p583 = scmp.lt.s32.totalorder %s26, 1
      %s584 = scalar_select %p583, %s26, 1
      %s585 = smul.addr %s584, 8
      %s586 = scalar_lea.vmem %s9, %s585
      %p587 = scmp.lt.s32.totalorder %s26, 1
      %s588 = scalar_select %p587, %s26, 1
      %s589 = smul.addr %s588, 4
      %s590 = smul.addr %s589, 8
      %s591 = scalar_lea.vmem %s10, %s590
      %p592 = scmp.lt.s32.totalorder %s26, 1
      %s593 = scalar_select %p592, %s26, 1
      %s594 = scalar_lea.vmem %s11, %s593
      %p595 = scmp.lt.s32.totalorder %s26, 1
      %s596 = scalar_select %p595, %s26, 1
      %s597 = scalar_lea.vmem %s12, %s596
      %p598 = scmp.lt.s32.totalorder %s26, 1
      %s599 = scalar_select %p598, %s26, 1
      %s600 = smul.addr %s599, 8
      %s601 = smul.addr %s600, 2
      %s602 = scalar_lea.vmem %s13, %s601
      %p603 = scmp.lt.s32.totalorder %s26, 1
      %s604 = scalar_select %p603, %s26, 1
      %s605 = smul.addr %s604, 2
      %s606 = smul.addr %s605, 2
      %s607 = scalar_lea.vmem %s14, %s606
      %p608 = scmp.eq.s32.totalorder %s26, 0
      %v609 = vld [vmem:[%s567] sm:$0xff]
      %v610 = vld [vmem:[%s575] sm:$0xff]
      %v611 = vld [vmem:[%s575 + $0x8] sm:$0xff]
      %v612 = vld [vmem:[%s575 + $0x10] sm:$0xff]
      %v613 = vld [vmem:[%s575 + $0x18] sm:$0xff]
      %v614 = vld [vmem:[%s582] sm:$0xff]
      %v615 = vld [vmem:[%s586] sm:$0xff]
      %v616 = vld [vmem:[%s591] sm:$0xff]
      %v617 = vld [vmem:[%s591 + $0x8] sm:$0xff]
      %v618 = vld [vmem:[%s591 + $0x10] sm:$0xff]
      %v619 = vld [vmem:[%s591 + $0x18] sm:$0xff]
      %v620 = vld [vmem:[%s570] sm:$0x1]
      %v622 = vperm.slane %v620, 0
      %v624 = vld [vmem:[%s578] sm:$0x1]
      %v626 = vperm.slane %v624, 0
      %v628 = vld [vmem:[%s594] sm:$0x1]
      %v630 = vperm.slane %v628, 0
      %v632 = vld [vmem:[%s597] sm:$0x1]
      %v634 = vperm.slane %v632, 0
      loop: start=0, step=1, limit=8
      $region73: #{brits_forward.1} parent=71 // loop_pre_header
        _
      $region74: #{brits_forward.1} parent=71 // loop_header
        %s637 = sphi 0, %s641
        %p638 = scmp.ge.s32.totalorder %s637, 8
        %v642 = vphi 0.0, %v830
        %v643 = vphi 0.0, %v824
      $region75: #{brits_forward.1} parent=71 // loop_header_branch
        %640 = sbr.rel (%p638) target = $region79
      $region76: #{brits_forward.1} parent=71 // loop_body
        %s644 = ssub.s32 7, %s637
        %s645 = scalar_select %p608, %s637, %s644
        %s646 = smul.u32 %s645, 2
        %s647 = scalar_lea.vmem %s0, %s646
        %v648 = vld [vmem:[%s647] sm:$0x3]
        %s649 = scalar_lea.vmem %s1, %s646
        %v650 = vld [vmem:[%s649] sm:$0x3]
        %s651 = smul.u32 %s637, 2
        %s652 = scalar_lea.vmem %s2, %s651
        %v653 = vld [vmem:[%s652] sm:$0x3]
        %s654 = scalar_lea.vmem %s3, %s651
        %v655 = vld [vmem:[%s654] sm:$0x3]
        %s656 = scalar_select %p608, 1, 0
        %v657 = vstv %s656
        %vm658 = vcmp.eq.s32.totalorder %v657, 1
        %v659 = vsel %vm658, %v653, %v655
        %vm660 = vcmask 64512
        %v662 = vsel %vm660, %v659, 0
        %664 = vmatpush.msra.mxu0 0.0
        %665 = vmatpush.msra.mxu0 0.0
        %666 = vmatpush.msra.mxu0 0.0
        %667 = vmatpush.msra.mxu0 0.0
        %668 = vmatpush.msra.mxu0 0.0
        %669 = vmatpush.msra.mxu0 0.0
        %670 = vmatpush.msra.mxu0 0.0
        %671 = vmatpush.msra.mxu0 0.0
        %672 = vmatpush.msra.mxu0 0.0
        %673 = vmatpush.msra.mxu0 0.0
        %674 = vmatpush.msra.mxu0 0.0
        %675 = vmatpush.msra.mxu0 0.0
        %676 = vmatpush.msra.mxu0 0.0
        %677 = vmatpush.msra.mxu0 0.0
        %678 = vmatpush.msra.mxu0 0.0
        %679 = vmatpush.msra.mxu0 %v609
        %680 = vmatmul.f32.gmra.mxu0 %v662
        %v681 = vpop.f32.mrf.mxu0
        %v682 = vadd.f32 %v622, %v681
        %683 = vdwg.mxu0
        %v684 = vmax.f32 %v682, 0.0
        %v685 = vsub.f32 0.0, %v684
        %v686 = vmul.f32 %v685, 1.442695
        %v687 = vpow.pop %v686
        %689 = vrot.lane.b32.xlu0 %v687, 96
        %v690 = vpop.permute.xlu0 %689
        %v692 = vmul.f32 %v642, %v690
        %694 = vrot.lane.b32.xlu0 %v692, 32
        %v695 = vpop.permute.xlu0 %694
        %vm696 = vcmask 261120
        %v697 = vsel %vm696, %v695, 0
        %699 = vmatpush.msra.mxu0 0.0
        %700 = vmatpush.msra.mxu0 0.0
        %701 = vmatpush.msra.mxu0 0.0
        %702 = vmatpush.msra.mxu0 0.0
        %703 = vmatpush.msra.mxu0 0.0
        %704 = vmatpush.msra.mxu0 0.0
        %705 = vmatpush.msra.mxu0 0.0
        %706 = vmatpush.msra.mxu0 0.0
        %707 = vmatpush.msra.mxu0 0.0
        %708 = vmatpush.msra.mxu0 0.0
        %709 = vmatpush.msra.mxu0 0.0
        %710 = vmatpush.msra.mxu0 0.0
        %711 = vmatpush.msra.mxu0 %v613
        %712 = vmatpush.msra.mxu0 %v612
        %713 = vmatpush.msra.mxu0 %v611
        %714 = vmatpush.msra.mxu0 %v610
        %715 = vmatmul.f32.gmra.mxu0 %v697
        %v716 = vpop.f32.mrf.mxu0
        %v717 = vadd.f32 %v626, %v716
        %718 = vdwg.mxu0
        %v719 = vmul.f32 %v650, %v648
        %v720 = vsub.f32 1.0, %v650
        %v721 = vmul.f32 %v720, %v717
        %v722 = vadd.f32 %v719, %v721
        %s723 = scalar_lea.vmem %s602, %s646
        %vm724 = vcmask 58368
        %725 = vst.msk [vmem:[%s723] sm:$0x3] %vm724, %v722
        %v727 = vsel %vm660, %v650, 0
        %729 = vmatpush.msra.mxu0 0.0
        %730 = vmatpush.msra.mxu0 0.0
        %731 = vmatpush.msra.mxu0 0.0
        %732 = vmatpush.msra.mxu0 0.0
        %733 = vmatpush.msra.mxu0 0.0
        %734 = vmatpush.msra.mxu0 0.0
        %735 = vmatpush.msra.mxu0 0.0
        %736 = vmatpush.msra.mxu0 0.0
        %737 = vmatpush.msra.mxu0 0.0
        %738 = vmatpush.msra.mxu0 0.0
        %739 = vmatpush.msra.mxu0 0.0
        %740 = vmatpush.msra.mxu0 0.0
        %741 = vmatpush.msra.mxu0 0.0
        %742 = vmatpush.msra.mxu0 0.0
        %743 = vmatpush.msra.mxu0 0.0
        %744 = vmatpush.msra.mxu0 %v615
        %745 = vmatmul.f32.gmra.mxu0 %v727
        %v746 = vpop.f32.mrf.mxu0
        %v747 = vadd.f32 0.0, %v746
        %748 = vdwg.mxu0
        %v750 = vsel %vm660, %v722, 0
        %752 = vmatpush.msra.mxu0 0.0
        %753 = vmatpush.msra.mxu0 0.0
        %754 = vmatpush.msra.mxu0 0.0
        %755 = vmatpush.msra.mxu0 0.0
        %756 = vmatpush.msra.mxu0 0.0
        %757 = vmatpush.msra.mxu0 0.0
        %758 = vmatpush.msra.mxu0 0.0
        %759 = vmatpush.msra.mxu0 0.0
        %760 = vmatpush.msra.mxu0 0.0
        %761 = vmatpush.msra.mxu0 0.0
        %762 = vmatpush.msra.mxu0 0.0
        %763 = vmatpush.msra.mxu0 0.0
        %764 = vmatpush.msra.mxu0 0.0
        %765 = vmatpush.msra.mxu0 0.0
        %766 = vmatpush.msra.mxu0 0.0
        %767 = vmatpush.msra.mxu0 %v614
        %768 = vmatmul.f32.gmra.mxu0 %v750
        %v769 = vpop.f32.mrf.mxu0
        %v770 = vadd.f32 %v747, %v769
        %771 = vdwg.mxu0
        %772 = vmatpush.msra.mxu0 0.0
        %773 = vmatpush.msra.mxu0 0.0
        %774 = vmatpush.msra.mxu0 0.0
        %775 = vmatpush.msra.mxu0 0.0
        %776 = vmatpush.msra.mxu0 0.0
        %777 = vmatpush.msra.mxu0 0.0
        %778 = vmatpush.msra.mxu0 0.0
        %779 = vmatpush.msra.mxu0 0.0
        %780 = vmatpush.msra.mxu0 0.0
        %781 = vmatpush.msra.mxu0 0.0
        %782 = vmatpush.msra.mxu0 0.0
        %783 = vmatpush.msra.mxu0 0.0
        %784 = vmatpush.msra.mxu0 %v619
        %785 = vmatpush.msra.mxu0 %v618
        %786 = vmatpush.msra.mxu0 %v617
        %787 = vmatpush.msra.mxu0 %v616
        %788 = vmatmul.f32.gmra.mxu0 %v697
        %v789 = vpop.f32.mrf.mxu0
        %v790 = vadd.f32 0.0, %v789
        %791 = vdwg.mxu0
        %v792 = vadd.f32 %v770, %v790
        %v793 = vadd.f32 %v792, %v630
        %v794 = vxor.u32 %v793, 2147483648
        %v795 = vmul.f32 %v794, 1.442695
        %v796 = vpow.pop %v795
        %v797 = vadd.f32 %v796, 1.0
        %v798 = vrcp.pop %v797
        %v799 = vmul.f32 %v797, %v798
        %v800 = vsub.f32 1.0, %v799
        %v801 = vmul.f32 %v798, %v800
        %v802 = vadd.f32 %v798, %v801
        %vm803 = vweird.f32 %v797
        %vm804 = vweird.f32 %v798
        %vm805 = vmor %vm803, %vm804
        %v806 = vsel %vm805, %v798, %v802
        %v807 = vand.u32 2147483647, %v797
        %vm808 = vcmp.eq.f32.partialorder %v807, 8.507059e+37
        %v809 = vand.u32 %v797, 2147483648
        %v810 = vor.u32 1.1754944e-38, %v809
        %v811 = vsel %vm808, %v810, %v806
        %v812 = vmul.f32 1.0, %v811
        %v813 = vtanh.pop %v793
        %v814 = vmul.f32 %v812, %v643
        %816 = vrot.lane.b32.xlu0 %v813, 64
        %v817 = vpop.permute.xlu0 %816
        %v819 = vmul.f32 %v812, %v817
        %821 = vrot.lane.b32.xlu0 %v819, 32
        %v822 = vpop.permute.xlu0 %821
        %v824 = vadd.f32 %v814, %v822
        %v825 = vtanh.pop %v824
        %827 = vrot.lane.b32.xlu0 %v825, 64
        %v828 = vpop.permute.xlu0 %827
        %v830 = vmul.f32 %v812, %v828
      $region77: #{brits_forward.1} parent=71 // loop_footer
        %s641 = sadd.s32 1, %s637
      $region78: #{brits_forward.1} parent=71 // loop_footer_branch
        %636 = sbr.rel target = $region74
      $region79: #{brits_forward.1} parent=71 // loop_exit
        _
      %832 = vrot.lane.b32.xlu0 %v642, 32
      %v833 = vpop.permute.xlu0 %832
      %vm834 = vcmask 261120
      %v835 = vsel %vm834, %v833, 0
      %837 = vmatpush.msra.mxu0 0.0
      %838 = vmatpush.msra.mxu0 0.0
      %839 = vmatpush.msra.mxu0 0.0
      %840 = vmatpush.msra.mxu0 0.0
      %841 = vmatpush.msra.mxu0 0.0
      %842 = vmatpush.msra.mxu0 0.0
      %843 = vmatpush.msra.mxu0 0.0
      %844 = vmatpush.msra.mxu0 0.0
      %845 = vmatpush.msra.mxu0 0.0
      %846 = vmatpush.msra.mxu0 0.0
      %847 = vmatpush.msra.mxu0 0.0
      %848 = vmatpush.msra.mxu0 0.0
      %849 = vmatpush.msra.mxu0 %v613
      %850 = vmatpush.msra.mxu0 %v612
      %851 = vmatpush.msra.mxu0 %v611
      %852 = vmatpush.msra.mxu0 %v610
      %853 = vmatmul.f32.gmra.mxu0 %v835
      %v854 = vpop.f32.mrf.mxu0
      %v855 = vadd.f32 %v626, %v854
      %856 = vdwg.mxu0
      %vm857 = vcmask 58368
      %858 = vst.msk [vmem:[%s607] sm:$0x3] %vm857, %v855
      %859 = vmatpush.msra.mxu0 0.0
      %860 = vmatpush.msra.mxu0 0.0
      %861 = vmatpush.msra.mxu0 0.0
      %862 = vmatpush.msra.mxu0 0.0
      %863 = vmatpush.msra.mxu0 0.0
      %864 = vmatpush.msra.mxu0 0.0
      %865 = vmatpush.msra.mxu0 0.0
      %866 = vmatpush.msra.mxu0 0.0
      %867 = vmatpush.msra.mxu0 0.0
      %868 = vmatpush.msra.mxu0 0.0
      %869 = vmatpush.msra.mxu0 0.0
      %870 = vmatpush.msra.mxu0 0.0
      %871 = vmatpush.msra.mxu0 %v619
      %872 = vmatpush.msra.mxu0 %v618
      %873 = vmatpush.msra.mxu0 %v617
      %874 = vmatpush.msra.mxu0 %v616
      %875 = vmatmul.f32.gmra.mxu0 %v835
      %v876 = vpop.f32.mrf.mxu0
      %v877 = vadd.f32 0.0, %v876
      %878 = vdwg.mxu0
      %vm879 = vcmask 64512
      %v881 = vsel %vm879, %v855, 0
      %883 = vmatpush.msra.mxu0 0.0
      %884 = vmatpush.msra.mxu0 0.0
      %885 = vmatpush.msra.mxu0 0.0
      %886 = vmatpush.msra.mxu0 0.0
      %887 = vmatpush.msra.mxu0 0.0
      %888 = vmatpush.msra.mxu0 0.0
      %889 = vmatpush.msra.mxu0 0.0
      %890 = vmatpush.msra.mxu0 0.0
      %891 = vmatpush.msra.mxu0 0.0
      %892 = vmatpush.msra.mxu0 0.0
      %893 = vmatpush.msra.mxu0 0.0
      %894 = vmatpush.msra.mxu0 0.0
      %895 = vmatpush.msra.mxu0 0.0
      %896 = vmatpush.msra.mxu0 0.0
      %897 = vmatpush.msra.mxu0 0.0
      %898 = vmatpush.msra.mxu0 %v614
      %899 = vmatmul.f32.gmra.mxu0 %v881
      %v900 = vpop.f32.mrf.mxu0
      %v901 = vadd.f32 %v877, %v900
      %902 = vdwg.mxu0
      %v903 = vadd.f32 %v901, %v634
      %v904 = vxor.u32 %v903, 2147483648
      %v905 = vmul.f32 %v904, 1.442695
      %v906 = vpow.pop %v905
      %v907 = vadd.f32 %v906, 1.0
      %v908 = vrcp.pop %v907
      %v909 = vmul.f32 %v907, %v908
      %v910 = vsub.f32 1.0, %v909
      %v911 = vmul.f32 %v908, %v910
      %v912 = vadd.f32 %v908, %v911
      %vm913 = vweird.f32 %v907
      %vm914 = vweird.f32 %v908
      %vm915 = vmor %vm913, %vm914
      %v916 = vsel %vm915, %v908, %v912
      %v917 = vand.u32 2147483647, %v907
      %vm918 = vcmp.eq.f32.partialorder %v917, 8.507059e+37
      %v919 = vand.u32 %v907, 2147483648
      %v920 = vor.u32 1.1754944e-38, %v919
      %v921 = vsel %vm918, %v920, %v916
      %v922 = vmul.f32 1.0, %v921
      %v923 = vtanh.pop %v903
      %v924 = vmul.f32 %v922, %v643
      %926 = vrot.lane.b32.xlu0 %v923, 64
      %v927 = vpop.permute.xlu0 %926
      %v929 = vmul.f32 %v922, %v927
      %931 = vrot.lane.b32.xlu0 %v929, 32
      %v932 = vpop.permute.xlu0 %931
      %v934 = vadd.f32 %v924, %v932
      %v935 = vtanh.pop %v934
      %937 = vrot.lane.b32.xlu0 %v935, 64
      %v938 = vpop.permute.xlu0 %937
      %v940 = vmul.f32 %v922, %v938
      %942 = vrot.lane.b32.xlu0 %v940, 32
      %v943 = vpop.permute.xlu0 %942
      %v944 = vsel %vm834, %v943, 0
      %946 = vmatpush.msra.mxu0 0.0
      %947 = vmatpush.msra.mxu0 0.0
      %948 = vmatpush.msra.mxu0 0.0
      %949 = vmatpush.msra.mxu0 0.0
      %950 = vmatpush.msra.mxu0 0.0
      %951 = vmatpush.msra.mxu0 0.0
      %952 = vmatpush.msra.mxu0 0.0
      %953 = vmatpush.msra.mxu0 0.0
      %954 = vmatpush.msra.mxu0 0.0
      %955 = vmatpush.msra.mxu0 0.0
      %956 = vmatpush.msra.mxu0 0.0
      %957 = vmatpush.msra.mxu0 0.0
      %958 = vmatpush.msra.mxu0 %v613
      %959 = vmatpush.msra.mxu0 %v612
      %960 = vmatpush.msra.mxu0 %v611
      %961 = vmatpush.msra.mxu0 %v610
      %962 = vmatmul.f32.gmra.mxu0 %v944
      %v963 = vpop.f32.mrf.mxu0
      %v964 = vadd.f32 %v626, %v963
      %965 = vdwg.mxu0
      %s966 = scalar_lea.vmem %s607, 2
      %967 = vst.msk [vmem:[%s966] sm:$0x3] %vm857, %v964
      %p968 = scmp.lt.s32.totalorder %s26, 1
      %s969 = scalar_select %p968, %s26, 1
      %s970 = smul.addr %s969, 8
      %s971 = smul.addr %s970, 2
      %s972 = scalar_lea.vmem %s13, %s971
      %p973 = scmp.lt.s32.totalorder %s26, 1
      %s974 = scalar_select %p973, %s26, 1
      %s975 = smul.addr %s974, 2
      %s976 = smul.addr %s975, 2
      %s977 = scalar_lea.vmem %s14, %s976
      // Predicated region
      $region80: #{brits_forward.1} parent=71 // pred_check
        %p978 = pneg %p362
      $region81: #{brits_forward.1} parent=71 // pred_check_branch
        %980 = sbr.rel (%p978) target = $region83
      $region82: #{brits_forward.1} parent=71 // pred_region
        _
      $region83: #{brits_forward.1} parent=71 // pred_fallthru
        _
      // Predicated region
      $region84: #{brits_forward.1} parent=71 // pred_check
        %p981 = pneg %p388
      $region85: #{brits_forward.1} parent=71 // pred_check_branch
        %983 = sbr.rel (%p981) target = $region87
      $region86: #{brits_forward.1} parent=71 // pred_region
        _
      $region87: #{brits_forward.1} parent=71 // pred_fallthru
        _
    $region72: #{brits_forward.1} parent=5 // pred_fallthru
      _
    %p984 = scmp.le.s32.totalorder 2, %s21
    // Predicated region
    $region88: #{brits_forward.1} parent=5 // pred_check
      %p985 = pneg %p984
    $region89: #{brits_forward.1} parent=5 // pred_check_branch
      %987 = sbr.rel (%p985) target = $region91
    $region90: #{brits_forward.1} parent=5 // pred_region
      %s988 = ssub.s32 %s21, 2
      // Predicated region
      $region92: #{brits_forward.1} parent=90 // pred_check
        %p989 = pneg %p368
      $region93: #{brits_forward.1} parent=90 // pred_check_branch
        %991 = sbr.rel (%p989) target = $region95
      $region94: #{brits_forward.1} parent=90 // pred_region
        %p992 = scmp.lt.s32.totalorder %s27, 1
        %s993 = scalar_select %p992, %s27, 1
        %s994 = smul.addr %s993, 8
        %s995 = smul.addr %s994, 2
        %s996 = scalar_lea.vmem %s13, %s995
      $region95: #{brits_forward.1} parent=90 // pred_fallthru
        _
      // Predicated region
      $region96: #{brits_forward.1} parent=90 // pred_check
        %p997 = pneg %p394
      $region97: #{brits_forward.1} parent=90 // pred_check_branch
        %999 = sbr.rel (%p997) target = $region99
      $region98: #{brits_forward.1} parent=90 // pred_region
        %p1000 = scmp.lt.s32.totalorder %s27, 1
        %s1001 = scalar_select %p1000, %s27, 1
        %s1002 = smul.addr %s1001, 2
        %s1003 = smul.addr %s1002, 2
        %s1004 = scalar_lea.vmem %s14, %s1003
      $region99: #{brits_forward.1} parent=90 // pred_fallthru
        _
    $region91: #{brits_forward.1} parent=5 // pred_fallthru
      _
  $region6: #{brits_forward.1} parent=0 // loop_footer
    %s25 = sadd.s32 1, %s21
  $region7: #{brits_forward.1} parent=0 // loop_footer_branch
    %20 = sbr.rel target = $region3
  $region8: #{brits_forward.1} parent=0 // loop_exit
    _

</llo_original>
